<compile_context>
chip_gen: v6e
topology: v6e:2x2x1
jax: 0.10.0
libtpu: 0.0.40
codegen_flags: <defaults>
</compile_context>

<pallas_src>
import functools
import math

import jax
import jax.numpy as jnp
from jax.experimental import pallas as pl
from jax.experimental.pallas import tpu as pltpu

NEG_INF = -1e9  # finite stand-in for masked (-inf) attention scores


# ---------------------------------------------------------------- shared math
def _layer_norm(x, gamma, beta, eps=1e-5):
    mu = jnp.mean(x, axis=-1, keepdims=True)
    var = jnp.mean((x - mu) ** 2, axis=-1, keepdims=True)
    return (x - mu) * jax.lax.rsqrt(var + eps) * gamma + beta


def _gelu(x):
    # TODO(synk): PositionwiseFeedForward source not shown; tanh-approx GELU
    # is used for both the kernel and the JAX reference so they stay consistent.
    return 0.5 * x * (1.0 + jnp.tanh(0.7978845608028654 * (x + 0.044715 * x * x * x)))


# ---------------------------------------------------------------- layer kernel
def transformer_layer_kernel(x_ref, pad_ref,
                             ln1_g_ref, ln1_b_ref,
                             wqkv_ref, bqkv_ref, wo_ref, bo_ref,
                             ln2_g_ref, ln2_b_ref,
                             w1_ref, b1_ref, w2_ref, b2_ref,
                             out_ref, *, heads, causal):
    x = x_ref[...].astype(jnp.float32)        # (S, D)
    S, D = x.shape
    hd = D // heads
    scale = 1.0 / math.sqrt(hd)

    # additive attention bias built in-kernel: (1, S) pad row (+ causal term)
    bias = pad_ref[...].astype(jnp.float32)   # (1, S) broadcasts over query rows
    if causal:
        row = jax.lax.broadcasted_iota(jnp.int32, (S, S), 0)
        col = jax.lax.broadcasted_iota(jnp.int32, (S, S), 1)
        bias = bias + jnp.where(col > row, NEG_INF, 0.0)

    # a = ln_attn(x)  (elementwise math in f32)
    a = _layer_norm(x, ln1_g_ref[...], ln1_b_ref[...])

    # fused QKV projection (MultiheadAttention in_proj); bf16 MXU, f32 accumulate
    qkv = jnp.dot(a.astype(jnp.bfloat16), wqkv_ref[...],
                  preferred_element_type=jnp.float32) + bqkv_ref[...]
    q = qkv[:, 0:D]
    k = qkv[:, D:2 * D]
    v = qkv[:, 2 * D:3 * D]

    # per-head attention; output projection accumulated per head (no concat)
    wo = wo_ref[...]                          # bf16 (D, D)
    attn = jnp.zeros((S, D), jnp.float32)
    for h in range(heads):
        sl = slice(h * hd, (h + 1) * hd)
        qh = (q[:, sl] * scale).astype(jnp.bfloat16)   # fold 1/sqrt(hd) into q
        kh = k[:, sl].astype(jnp.bfloat16)
        vh = v[:, sl].astype(jnp.bfloat16)
        s = jax.lax.dot_general(qh, kh, (((1,), (1,)), ((), ())),
                                preferred_element_type=jnp.float32)
        s = s + bias
        s = s - jnp.max(s, axis=-1, keepdims=True)
        p = jnp.exp(s)
        p = p * pl.reciprocal(jnp.sum(p, axis=-1, keepdims=True), approx=True)
        oh = jnp.dot(p.astype(jnp.bfloat16), vh, preferred_element_type=jnp.float32)
        attn = attn + jnp.dot(oh.astype(jnp.bfloat16), wo[sl, :],
                              preferred_element_type=jnp.float32)
    attn = attn + bo_ref[...]

    # reference module adds BOTH the attention output and the ln_attn output
    x = x + attn + a

    # feed-forward block
    f_in = _layer_norm(x, ln2_g_ref[...], ln2_b_ref[...])
    h1 = _gelu(jnp.dot(f_in.astype(jnp.bfloat16), w1_ref[...],
                       preferred_element_type=jnp.float32) + b1_ref[...])
    ff = jnp.dot(h1.astype(jnp.bfloat16), w2_ref[...],
                 preferred_element_type=jnp.float32) + b2_ref[...]

    out_ref[...] = (x + ff).astype(out_ref.dtype)


def run_layer(x, pad_bias, lp, heads, causal):
    B, S, D = x.shape
    F = lp["w1"].shape[1]  # rate * dims
    bf16 = jnp.bfloat16

    def const(shape):
        zeros = (0,) * len(shape)
        return pl.BlockSpec(shape, lambda b: zeros)

    # TODO(synk): at large D (v7x, 64 MiB VMEM) the weights should be streamed
    # via an extra feature-tiled grid axis instead of being fully resident;
    # bf16 weights already halve the resident footprint and DMA traffic.
    in_specs = [
        pl.BlockSpec((None, S, D), lambda b: (b, 0, 0)),   # x
        pl.BlockSpec((None, 1, S), lambda b: (b, 0, 0)),   # pad bias row
        const((1, D)), const((1, D)),                       # ln_attn
        const((D, 3 * D)), const((1, 3 * D)),               # in_proj
        const((D, D)), const((1, D)),                       # out_proj
        const((1, D)), const((1, D)),                       # ln_ff
        const((D, F)), const((1, F)),                       # ff linear 1
        const((F, D)), const((1, D)),                       # ff linear 2
    ]
    kernel = functools.partial(transformer_layer_kernel, heads=heads, causal=causal)
    return pl.pallas_call(
        kernel,
        grid=(B,),
        in_specs=in_specs,
        out_specs=pl.BlockSpec((None, S, D), lambda b: (b, 0, 0)),
        out_shape=jax.ShapeDtypeStruct((B, S, D), jnp.float32),
        compiler_params=pltpu.CompilerParams(
            dimension_semantics=("parallel",),           # megacore over batch
            vmem_limit_bytes=64 * 1024 * 1024),
    )(x, pad_bias,
      lp["ln1_g"], lp["ln1_b"],
      lp["wqkv"].astype(bf16), lp["bqkv"],
      lp["wo"].astype(bf16), lp["bo"],
      lp["ln2_g"], lp["ln2_b"],
      lp["w1"].astype(bf16), lp["b1"],
      lp["w2"].astype(bf16), lp["b2"])


# ---------------------------------------------------------------- head kernel
def lm_head_kernel(x_ref, g_ref, b_ref, emb_ref, out_ref):
    # LayerNorm in f32, logits matmul on bf16 operands against the (TV, D)
    # embedding tile (contraction on D) -- no transposed copy of tok_emb needed.
    x = _layer_norm(x_ref[...].astype(jnp.float32), g_ref[...], b_ref[...])
    logits = jax.lax.dot_general(
        x.astype(jnp.bfloat16), emb_ref[...],
        (((1,), (1,)), ((), ())),
        preferred_element_type=jnp.float32)
    out_ref[...] = logits.astype(out_ref.dtype)


def run_head(x, gamma, beta, emb_bf16, *, tv):
    B, S, D = x.shape
    V = emb_bf16.shape[0]
    return pl.pallas_call(
        lm_head_kernel,
        grid=(B, V // tv),
        in_specs=[
            pl.BlockSpec((None, S, D), lambda b, v: (b, 0, 0)),
            pl.BlockSpec((1, D), lambda b, v: (0, 0)),
            pl.BlockSpec((1, D), lambda b, v: (0, 0)),
            pl.BlockSpec((tv, D), lambda b, v: (v, 0)),      # vocab tile streams
        ],
        out_specs=pl.BlockSpec((None, S, tv), lambda b, v: (b, 0, v)),
        out_shape=jax.ShapeDtypeStruct((B, S, V), jnp.float32),
        compiler_params=pltpu.CompilerParams(
            dimension_semantics=("parallel", "parallel")),
    )(x, gamma, beta, emb_bf16)


# ---------------------------------------------------------------- full forward
@functools.partial(jax.jit, static_argnames=("heads", "pad_idx", "bidirectional"))
def transformer_forward(ids, params, *, heads, pad_idx, bidirectional=True):
    """Eval-mode Transformer.forward with past=None (dropout = identity)."""
    B, S = ids.shape

    # PadMasking: additive -inf on key positions whose token == pad_idx.
    # Only a (B, 1, S) row is passed; the full (S, S) bias is built in-kernel.
    pad_bias = jnp.where(ids == pad_idx, NEG_INF, 0.0).astype(jnp.float32)[:, None, :]

    # token + positional embeddings (gather = glue)
    x = params["tok_emb"][ids] + params["pos_emb"][:S][None]

    causal = not bidirectional
    presents = []
    for lp in params["layers"]:
        x = run_layer(x, pad_bias, lp, heads, causal)
        presents.append(None)  # reference appends `past` (None when no past)

    V = params["tok_emb"].shape[0]
    tv = 128 if V % 128 == 0 else V
    logits = run_head(x, params["ln_head_g"], params["ln_head_b"],
                      params["tok_emb"].astype(jnp.bfloat16), tv=tv)
    return logits, presents


# ---------------------------------------------------------------- reference
def reference_forward(ids, params, *, heads, pad_idx, bidirectional=True):
    B, S = ids.shape
    D = params["tok_emb"].shape[1]
    hd = D // heads
    bias = jnp.where(ids == pad_idx, NEG_INF, 0.0).astype(jnp.float32)[:, None, :]
    bias = jnp.broadcast_to(bias, (B, S, S))
    if not bidirectional:
        causal = jnp.where(jnp.arange(S)[None, :] > jnp.arange(S)[:, None],
                           NEG_INF, 0.0)
        bias = bias + causal[None]
    x = params["tok_emb"][ids] + params["pos_emb"][:S][None]
    for lp in params["layers"]:
        a = _layer_norm(x, lp["ln1_g"], lp["ln1_b"])
        qkv = a @ lp["wqkv"] + lp["bqkv"]
        q = qkv[..., :D].reshape(B, S, heads, hd)
        k = qkv[..., D:2 * D].reshape(B, S, heads, hd)
        v = qkv[..., 2 * D:].reshape(B, S, heads, hd)
        s = jnp.einsum("bqhd,bkhd->bhqk", q, k) / math.sqrt(hd) + bias[:, None]
        p = jax.nn.softmax(s, axis=-1)
        o = jnp.einsum("bhqk,bkhd->bqhd", p, v).reshape(B, S, D)
        attn = o @ lp["wo"] + lp["bo"]
        x = x + attn + a
        f = _layer_norm(x, lp["ln2_g"], lp["ln2_b"])
        x = x + (_gelu(f @ lp["w1"] + lp["b1"]) @ lp["w2"] + lp["b2"])
    x = _layer_norm(x, params["ln_head_g"], params["ln_head_b"])
    return x @ params["tok_emb"].T


# ---------------------------------------------------------------- init / main
def init_params(key, layers, words, seq_len, dims, rate):
    keys = jax.random.split(key, 2 + layers)
    n = lambda k, shape, s=0.02: s * jax.random.normal(k, shape, jnp.float32)
    params = {
        "tok_emb": n(keys[0], (words, dims)),
        "pos_emb": n(keys[1], (seq_len, dims)),
        "ln_head_g": jnp.ones((1, dims), jnp.float32),
        "ln_head_b": jnp.zeros((1, dims), jnp.float32),
        "layers": [],
    }
    for i in range(layers):
        lk = jax.random.split(keys[2 + i], 8)
        params["layers"].append({
            "ln1_g": jnp.ones((1, dims), jnp.float32),
            "ln1_b": jnp.zeros((1, dims), jnp.float32),
            "wqkv": n(lk[0], (dims, 3 * dims)),
            "bqkv": n(lk[1], (1, 3 * dims), 0.01),
            "wo":   n(lk[2], (dims, dims)),
            "bo":   n(lk[3], (1, dims), 0.01),
            "ln2_g": jnp.ones((1, dims), jnp.float32),
            "ln2_b": jnp.zeros((1, dims), jnp.float32),
            "w1":   n(lk[4], (dims, rate * dims)),
            "b1":   n(lk[5], (1, rate * dims), 0.01),
            "w2":   n(lk[6], (rate * dims, dims)),
            "b2":   n(lk[7], (1, dims), 0.01),
        })
    return params


if __name__ == "__main__":
    B, S, D, H, L, V, RATE, PAD = 2, 8, 32, 4, 2, 256, 4, 0
    assert D % H == 0

    key = jax.random.PRNGKey(0)
    pkey, ikey = jax.random.split(key)
    params = init_params(pkey, L, V, S, D, RATE)

    ids = jax.random.randint(ikey, (B, S), 1, V, dtype=jnp.int32)
    ids = ids.at[0, S - 1].set(PAD)  # one pad token so PadMasking does something

    for bidir in (True, False):      # exercise both pad-only and pad+causal masks
        logits, presents = transformer_forward(ids, params, heads=H, pad_idx=PAD,
                                               bidirectional=bidir)
        logits = jax.block_until_ready(logits)

        assert logits.shape == (B, S, V), logits.shape
        assert bool(jnp.all(jnp.isfinite(logits)))
        assert len(presents) == L

        ref = reference_forward(ids, params, heads=H, pad_idx=PAD,
                                bidirectional=bidir)
        err = float(jnp.max(jnp.abs(logits - ref)))
        assert jnp.allclose(logits, ref, rtol=2e-2, atol=2e-2), \
            f"max abs err {err} (bidirectional={bidir})"

    # TODO(synk): training-mode dropout / torch.utils.checkpoint / incremental
    # `past` KV cache have no kernel equivalent here; eval-mode (dropout =
    # identity, past=None) is implemented.
    print("KERNEL_OK")
</pallas_src>

<mosaic_0001>
module attributes {stable_mosaic.version = 11 : i64} {
  func.func @transformer_layer_kernel(%arg0: i32, %arg1: memref<1x8x32xf32, #tpu.memory_space<vmem>>, %arg2: memref<1x1x8xf32, #tpu.memory_space<vmem>>, %arg3: memref<1x32xf32, #tpu.memory_space<vmem>>, %arg4: memref<1x32xf32, #tpu.memory_space<vmem>>, %arg5: memref<32x96xbf16, #tpu.memory_space<vmem>>, %arg6: memref<1x96xf32, #tpu.memory_space<vmem>>, %arg7: memref<32x32xbf16, #tpu.memory_space<vmem>>, %arg8: memref<1x32xf32, #tpu.memory_space<vmem>>, %arg9: memref<1x32xf32, #tpu.memory_space<vmem>>, %arg10: memref<1x32xf32, #tpu.memory_space<vmem>>, %arg11: memref<32x128xbf16, #tpu.memory_space<vmem>>, %arg12: memref<1x128xf32, #tpu.memory_space<vmem>>, %arg13: memref<128x32xbf16, #tpu.memory_space<vmem>>, %arg14: memref<1x32xf32, #tpu.memory_space<vmem>>, %arg15: memref<1x8x32xf32, #tpu.memory_space<vmem>>) attributes {dimension_semantics = [#tpu.dimension_semantics<parallel>], iteration_bounds = array<i64: 2>, scalar_prefetch = 0 : i64, scratch_operands = 0 : i64, tpu.core_type = #tpu.core_type<tc>, window_params = [{transform_indices = @transform_0, window_bounds = array<i64: 1, 8, 32>}, {transform_indices = @transform_1, window_bounds = array<i64: 1, 1, 8>}, {pipeline_mode = #tpu.pipeline_mode<synchronous>, transform_indices = @transform_2, window_bounds = array<i64: 1, 32>}, {pipeline_mode = #tpu.pipeline_mode<synchronous>, transform_indices = @transform_3, window_bounds = array<i64: 1, 32>}, {pipeline_mode = #tpu.pipeline_mode<synchronous>, transform_indices = @transform_4, window_bounds = array<i64: 32, 96>}, {pipeline_mode = #tpu.pipeline_mode<synchronous>, transform_indices = @transform_5, window_bounds = array<i64: 1, 96>}, {pipeline_mode = #tpu.pipeline_mode<synchronous>, transform_indices = @transform_6, window_bounds = array<i64: 32, 32>}, {pipeline_mode = #tpu.pipeline_mode<synchronous>, transform_indices = @transform_7, window_bounds = array<i64: 1, 32>}, {pipeline_mode = #tpu.pipeline_mode<synchronous>, transform_indices = @transform_8, window_bounds = array<i64: 1, 32>}, {pipeline_mode = #tpu.pipeline_mode<synchronous>, transform_indices = @transform_9, window_bounds = array<i64: 1, 32>}, {pipeline_mode = #tpu.pipeline_mode<synchronous>, transform_indices = @transform_10, window_bounds = array<i64: 32, 128>}, {pipeline_mode = #tpu.pipeline_mode<synchronous>, transform_indices = @transform_11, window_bounds = array<i64: 1, 128>}, {pipeline_mode = #tpu.pipeline_mode<synchronous>, transform_indices = @transform_12, window_bounds = array<i64: 128, 32>}, {pipeline_mode = #tpu.pipeline_mode<synchronous>, transform_indices = @transform_13, window_bounds = array<i64: 1, 32>}, {transform_indices = @transform_14, window_bounds = array<i64: 1, 8, 32>}]} {
    %c0 = arith.constant 0 : index
    %c0_0 = arith.constant 0 : index
    %c0_1 = arith.constant 0 : index
    %0 = vector.load %arg1[%c0, %c0_0, %c0_1] : memref<1x8x32xf32, #tpu.memory_space<vmem>>, vector<1x8x32xf32>
    %1 = vector.shape_cast %0 : vector<1x8x32xf32> to vector<8x32xf32>
    %c0_2 = arith.constant 0 : index
    %c0_3 = arith.constant 0 : index
    %c0_4 = arith.constant 0 : index
    %2 = vector.load %arg2[%c0_2, %c0_3, %c0_4] : memref<1x1x8xf32, #tpu.memory_space<vmem>>, vector<1x1x8xf32>
    %3 = vector.shape_cast %2 : vector<1x1x8xf32> to vector<1x8xf32>
    %c0_5 = arith.constant 0 : index
    %c0_6 = arith.constant 0 : index
    %4 = vector.load %arg3[%c0_5, %c0_6] : memref<1x32xf32, #tpu.memory_space<vmem>>, vector<1x32xf32>
    %c0_7 = arith.constant 0 : index
    %c0_8 = arith.constant 0 : index
    %5 = vector.load %arg4[%c0_7, %c0_8] : memref<1x32xf32, #tpu.memory_space<vmem>>, vector<1x32xf32>
    %cst = arith.constant dense<0.000000e+00> : vector<8xf32>
    %6 = vector.multi_reduction <add>, %1, %cst [1] : vector<8x32xf32> to vector<8xf32>
    %7 = vector.shape_cast %6 : vector<8xf32> to vector<8x1xf32>
    %cst_9 = arith.constant 3.200000e+01 : f32
    %8 = vector.broadcast %cst_9 : f32 to vector<8x1xf32>
    %9 = arith.divf %7, %8 : vector<8x1xf32>
    %10 = vector.broadcast %9 : vector<8x1xf32> to vector<8x32xf32>
    %11 = arith.subf %1, %10 : vector<8x32xf32>
    %12 = arith.mulf %11, %11 : vector<8x32xf32>
    %cst_10 = arith.constant dense<0.000000e+00> : vector<8xf32>
    %13 = vector.multi_reduction <add>, %12, %cst_10 [1] : vector<8x32xf32> to vector<8xf32>
    %14 = vector.shape_cast %13 : vector<8xf32> to vector<8x1xf32>
    %cst_11 = arith.constant 3.200000e+01 : f32
    %15 = vector.broadcast %cst_11 : f32 to vector<8x1xf32>
    %16 = arith.divf %14, %15 : vector<8x1xf32>
    %17 = vector.broadcast %9 : vector<8x1xf32> to vector<8x32xf32>
    %18 = arith.subf %1, %17 : vector<8x32xf32>
    %cst_12 = arith.constant 9.99999974E-6 : f32
    %19 = vector.broadcast %cst_12 : f32 to vector<8x1xf32>
    %20 = arith.addf %16, %19 : vector<8x1xf32>
    %21 = math.rsqrt %20 : vector<8x1xf32>
    %22 = vector.broadcast %21 : vector<8x1xf32> to vector<8x32xf32>
    %23 = arith.mulf %18, %22 : vector<8x32xf32>
    %24 = vector.broadcast %4 : vector<1x32xf32> to vector<8x32xf32>
    %25 = arith.mulf %23, %24 : vector<8x32xf32>
    %26 = vector.broadcast %5 : vector<1x32xf32> to vector<8x32xf32>
    %27 = arith.addf %25, %26 : vector<8x32xf32>
    %28 = arith.truncf %27 : vector<8x32xf32> to vector<8x32xbf16>
    %c0_13 = arith.constant 0 : index
    %c0_14 = arith.constant 0 : index
    %29 = vector.load %arg5[%c0_13, %c0_14] : memref<32x96xbf16, #tpu.memory_space<vmem>>, vector<32x96xbf16>
    %cst_15 = arith.constant dense<0.000000e+00> : vector<8x96xf32>
    %30 = tpu.matmul %28, %29, %cst_15 {dimension_numbers = #tpu.dot_dimension_numbers<[1], [0], [0], [1], [0, 0, 1, 1], [], []>} : vector<8x32xbf16>, vector<32x96xbf16>, vector<8x96xf32> -> vector<8x96xf32>
    %c0_16 = arith.constant 0 : index
    %c0_17 = arith.constant 0 : index
    %31 = vector.load %arg6[%c0_16, %c0_17] : memref<1x96xf32, #tpu.memory_space<vmem>>, vector<1x96xf32>
    %32 = vector.broadcast %31 : vector<1x96xf32> to vector<8x96xf32>
    %33 = arith.addf %30, %32 : vector<8x96xf32>
    %34 = vector.extract_strided_slice %33 {offsets = [0, 0], sizes = [8, 32], strides = [1, 1]} : vector<8x96xf32> to vector<8x32xf32>
    %35 = vector.extract_strided_slice %33 {offsets = [0, 32], sizes = [8, 32], strides = [1, 1]} : vector<8x96xf32> to vector<8x32xf32>
    %36 = vector.extract_strided_slice %33 {offsets = [0, 64], sizes = [8, 32], strides = [1, 1]} : vector<8x96xf32> to vector<8x32xf32>
    %c0_18 = arith.constant 0 : index
    %c0_19 = arith.constant 0 : index
    %37 = vector.load %arg7[%c0_18, %c0_19] : memref<32x32xbf16, #tpu.memory_space<vmem>>, vector<32x32xbf16>
    %cst_20 = arith.constant 0.000000e+00 : f32
    %38 = vector.broadcast %cst_20 : f32 to vector<8x32xf32>
    %39 = vector.extract_strided_slice %34 {offsets = [0, 0], sizes = [8, 8], strides = [1, 1]} : vector<8x32xf32> to vector<8x8xf32>
    %cst_21 = arith.constant 0.353553385 : f32
    %40 = vector.broadcast %cst_21 : f32 to vector<8x8xf32>
    %41 = arith.mulf %39, %40 : vector<8x8xf32>
    %42 = arith.truncf %41 : vector<8x8xf32> to vector<8x8xbf16>
    %43 = vector.extract_strided_slice %35 {offsets = [0, 0], sizes = [8, 8], strides = [1, 1]} : vector<8x32xf32> to vector<8x8xf32>
    %44 = arith.truncf %43 : vector<8x8xf32> to vector<8x8xbf16>
    %45 = vector.extract_strided_slice %36 {offsets = [0, 0], sizes = [8, 8], strides = [1, 1]} : vector<8x32xf32> to vector<8x8xf32>
    %46 = arith.truncf %45 : vector<8x8xf32> to vector<8x8xbf16>
    %cst_22 = arith.constant dense<0.000000e+00> : vector<8x8xf32>
    %47 = tpu.matmul %42, %44, %cst_22 {dimension_numbers = #tpu.dot_dimension_numbers<[1], [1], [0], [0], [0, 0, 1, 0], [], []>} : vector<8x8xbf16>, vector<8x8xbf16>, vector<8x8xf32> -> vector<8x8xf32>
    %48 = vector.broadcast %3 : vector<1x8xf32> to vector<8x8xf32>
    %49 = arith.addf %47, %48 : vector<8x8xf32>
    %cst_23 = arith.constant dense<0xFF800000> : vector<8xf32>
    %50 = vector.multi_reduction <maximumf>, %49, %cst_23 [1] : vector<8x8xf32> to vector<8xf32>
    %51 = vector.shape_cast %50 : vector<8xf32> to vector<8x1xf32>
    %52 = vector.broadcast %51 : vector<8x1xf32> to vector<8x8xf32>
    %53 = arith.subf %49, %52 : vector<8x8xf32>
    %54 = math.exp %53 : vector<8x8xf32>
    %cst_24 = arith.constant dense<0.000000e+00> : vector<8xf32>
    %55 = vector.multi_reduction <add>, %54, %cst_24 [1] : vector<8x8xf32> to vector<8xf32>
    %56 = vector.shape_cast %55 : vector<8xf32> to vector<8x1xf32>
    %57 = tpu.reciprocal %56 {approx = true} : vector<8x1xf32> -> vector<8x1xf32>
    %58 = vector.broadcast %57 : vector<8x1xf32> to vector<8x8xf32>
    %59 = arith.mulf %54, %58 : vector<8x8xf32>
    %60 = arith.truncf %59 : vector<8x8xf32> to vector<8x8xbf16>
    %cst_25 = arith.constant dense<0.000000e+00> : vector<8x8xf32>
    %61 = tpu.matmul %60, %46, %cst_25 {dimension_numbers = #tpu.dot_dimension_numbers<[1], [0], [0], [1], [0, 0, 1, 1], [], []>} : vector<8x8xbf16>, vector<8x8xbf16>, vector<8x8xf32> -> vector<8x8xf32>
    %62 = arith.truncf %61 : vector<8x8xf32> to vector<8x8xbf16>
    %63 = vector.extract_strided_slice %37 {offsets = [0, 0], sizes = [8, 32], strides = [1, 1]} : vector<32x32xbf16> to vector<8x32xbf16>
    %cst_26 = arith.constant dense<0.000000e+00> : vector<8x32xf32>
    %64 = tpu.matmul %62, %63, %cst_26 {dimension_numbers = #tpu.dot_dimension_numbers<[1], [0], [0], [1], [0, 0, 1, 1], [], []>} : vector<8x8xbf16>, vector<8x32xbf16>, vector<8x32xf32> -> vector<8x32xf32>
    %65 = arith.addf %38, %64 : vector<8x32xf32>
    %66 = vector.extract_strided_slice %34 {offsets = [0, 8], sizes = [8, 8], strides = [1, 1]} : vector<8x32xf32> to vector<8x8xf32>
    %cst_27 = arith.constant 0.353553385 : f32
    %67 = vector.broadcast %cst_27 : f32 to vector<8x8xf32>
    %68 = arith.mulf %66, %67 : vector<8x8xf32>
    %69 = arith.truncf %68 : vector<8x8xf32> to vector<8x8xbf16>
    %70 = vector.extract_strided_slice %35 {offsets = [0, 8], sizes = [8, 8], strides = [1, 1]} : vector<8x32xf32> to vector<8x8xf32>
    %71 = arith.truncf %70 : vector<8x8xf32> to vector<8x8xbf16>
    %72 = vector.extract_strided_slice %36 {offsets = [0, 8], sizes = [8, 8], strides = [1, 1]} : vector<8x32xf32> to vector<8x8xf32>
    %73 = arith.truncf %72 : vector<8x8xf32> to vector<8x8xbf16>
    %cst_28 = arith.constant dense<0.000000e+00> : vector<8x8xf32>
    %74 = tpu.matmul %69, %71, %cst_28 {dimension_numbers = #tpu.dot_dimension_numbers<[1], [1], [0], [0], [0, 0, 1, 0], [], []>} : vector<8x8xbf16>, vector<8x8xbf16>, vector<8x8xf32> -> vector<8x8xf32>
    %75 = vector.broadcast %3 : vector<1x8xf32> to vector<8x8xf32>
    %76 = arith.addf %74, %75 : vector<8x8xf32>
    %cst_29 = arith.constant dense<0xFF800000> : vector<8xf32>
    %77 = vector.multi_reduction <maximumf>, %76, %cst_29 [1] : vector<8x8xf32> to vector<8xf32>
    %78 = vector.shape_cast %77 : vector<8xf32> to vector<8x1xf32>
    %79 = vector.broadcast %78 : vector<8x1xf32> to vector<8x8xf32>
    %80 = arith.subf %76, %79 : vector<8x8xf32>
    %81 = math.exp %80 : vector<8x8xf32>
    %cst_30 = arith.constant dense<0.000000e+00> : vector<8xf32>
    %82 = vector.multi_reduction <add>, %81, %cst_30 [1] : vector<8x8xf32> to vector<8xf32>
    %83 = vector.shape_cast %82 : vector<8xf32> to vector<8x1xf32>
    %84 = tpu.reciprocal %83 {approx = true} : vector<8x1xf32> -> vector<8x1xf32>
    %85 = vector.broadcast %84 : vector<8x1xf32> to vector<8x8xf32>
    %86 = arith.mulf %81, %85 : vector<8x8xf32>
    %87 = arith.truncf %86 : vector<8x8xf32> to vector<8x8xbf16>
    %cst_31 = arith.constant dense<0.000000e+00> : vector<8x8xf32>
    %88 = tpu.matmul %87, %73, %cst_31 {dimension_numbers = #tpu.dot_dimension_numbers<[1], [0], [0], [1], [0, 0, 1, 1], [], []>} : vector<8x8xbf16>, vector<8x8xbf16>, vector<8x8xf32> -> vector<8x8xf32>
    %89 = arith.truncf %88 : vector<8x8xf32> to vector<8x8xbf16>
    %90 = vector.extract_strided_slice %37 {offsets = [8, 0], sizes = [8, 32], strides = [1, 1]} : vector<32x32xbf16> to vector<8x32xbf16>
    %cst_32 = arith.constant dense<0.000000e+00> : vector<8x32xf32>
    %91 = tpu.matmul %89, %90, %cst_32 {dimension_numbers = #tpu.dot_dimension_numbers<[1], [0], [0], [1], [0, 0, 1, 1], [], []>} : vector<8x8xbf16>, vector<8x32xbf16>, vector<8x32xf32> -> vector<8x32xf32>
    %92 = arith.addf %65, %91 : vector<8x32xf32>
    %93 = vector.extract_strided_slice %34 {offsets = [0, 16], sizes = [8, 8], strides = [1, 1]} : vector<8x32xf32> to vector<8x8xf32>
    %cst_33 = arith.constant 0.353553385 : f32
    %94 = vector.broadcast %cst_33 : f32 to vector<8x8xf32>
    %95 = arith.mulf %93, %94 : vector<8x8xf32>
    %96 = arith.truncf %95 : vector<8x8xf32> to vector<8x8xbf16>
    %97 = vector.extract_strided_slice %35 {offsets = [0, 16], sizes = [8, 8], strides = [1, 1]} : vector<8x32xf32> to vector<8x8xf32>
    %98 = arith.truncf %97 : vector<8x8xf32> to vector<8x8xbf16>
    %99 = vector.extract_strided_slice %36 {offsets = [0, 16], sizes = [8, 8], strides = [1, 1]} : vector<8x32xf32> to vector<8x8xf32>
    %100 = arith.truncf %99 : vector<8x8xf32> to vector<8x8xbf16>
    %cst_34 = arith.constant dense<0.000000e+00> : vector<8x8xf32>
    %101 = tpu.matmul %96, %98, %cst_34 {dimension_numbers = #tpu.dot_dimension_numbers<[1], [1], [0], [0], [0, 0, 1, 0], [], []>} : vector<8x8xbf16>, vector<8x8xbf16>, vector<8x8xf32> -> vector<8x8xf32>
    %102 = vector.broadcast %3 : vector<1x8xf32> to vector<8x8xf32>
    %103 = arith.addf %101, %102 : vector<8x8xf32>
    %cst_35 = arith.constant dense<0xFF800000> : vector<8xf32>
    %104 = vector.multi_reduction <maximumf>, %103, %cst_35 [1] : vector<8x8xf32> to vector<8xf32>
    %105 = vector.shape_cast %104 : vector<8xf32> to vector<8x1xf32>
    %106 = vector.broadcast %105 : vector<8x1xf32> to vector<8x8xf32>
    %107 = arith.subf %103, %106 : vector<8x8xf32>
    %108 = math.exp %107 : vector<8x8xf32>
    %cst_36 = arith.constant dense<0.000000e+00> : vector<8xf32>
    %109 = vector.multi_reduction <add>, %108, %cst_36 [1] : vector<8x8xf32> to vector<8xf32>
    %110 = vector.shape_cast %109 : vector<8xf32> to vector<8x1xf32>
    %111 = tpu.reciprocal %110 {approx = true} : vector<8x1xf32> -> vector<8x1xf32>
    %112 = vector.broadcast %111 : vector<8x1xf32> to vector<8x8xf32>
    %113 = arith.mulf %108, %112 : vector<8x8xf32>
    %114 = arith.truncf %113 : vector<8x8xf32> to vector<8x8xbf16>
    %cst_37 = arith.constant dense<0.000000e+00> : vector<8x8xf32>
    %115 = tpu.matmul %114, %100, %cst_37 {dimension_numbers = #tpu.dot_dimension_numbers<[1], [0], [0], [1], [0, 0, 1, 1], [], []>} : vector<8x8xbf16>, vector<8x8xbf16>, vector<8x8xf32> -> vector<8x8xf32>
    %116 = arith.truncf %115 : vector<8x8xf32> to vector<8x8xbf16>
    %117 = vector.extract_strided_slice %37 {offsets = [16, 0], sizes = [8, 32], strides = [1, 1]} : vector<32x32xbf16> to vector<8x32xbf16>
    %cst_38 = arith.constant dense<0.000000e+00> : vector<8x32xf32>
    %118 = tpu.matmul %116, %117, %cst_38 {dimension_numbers = #tpu.dot_dimension_numbers<[1], [0], [0], [1], [0, 0, 1, 1], [], []>} : vector<8x8xbf16>, vector<8x32xbf16>, vector<8x32xf32> -> vector<8x32xf32>
    %119 = arith.addf %92, %118 : vector<8x32xf32>
    %120 = vector.extract_strided_slice %34 {offsets = [0, 24], sizes = [8, 8], strides = [1, 1]} : vector<8x32xf32> to vector<8x8xf32>
    %cst_39 = arith.constant 0.353553385 : f32
    %121 = vector.broadcast %cst_39 : f32 to vector<8x8xf32>
    %122 = arith.mulf %120, %121 : vector<8x8xf32>
    %123 = arith.truncf %122 : vector<8x8xf32> to vector<8x8xbf16>
    %124 = vector.extract_strided_slice %35 {offsets = [0, 24], sizes = [8, 8], strides = [1, 1]} : vector<8x32xf32> to vector<8x8xf32>
    %125 = arith.truncf %124 : vector<8x8xf32> to vector<8x8xbf16>
    %126 = vector.extract_strided_slice %36 {offsets = [0, 24], sizes = [8, 8], strides = [1, 1]} : vector<8x32xf32> to vector<8x8xf32>
    %127 = arith.truncf %126 : vector<8x8xf32> to vector<8x8xbf16>
    %cst_40 = arith.constant dense<0.000000e+00> : vector<8x8xf32>
    %128 = tpu.matmul %123, %125, %cst_40 {dimension_numbers = #tpu.dot_dimension_numbers<[1], [1], [0], [0], [0, 0, 1, 0], [], []>} : vector<8x8xbf16>, vector<8x8xbf16>, vector<8x8xf32> -> vector<8x8xf32>
    %129 = vector.broadcast %3 : vector<1x8xf32> to vector<8x8xf32>
    %130 = arith.addf %128, %129 : vector<8x8xf32>
    %cst_41 = arith.constant dense<0xFF800000> : vector<8xf32>
    %131 = vector.multi_reduction <maximumf>, %130, %cst_41 [1] : vector<8x8xf32> to vector<8xf32>
    %132 = vector.shape_cast %131 : vector<8xf32> to vector<8x1xf32>
    %133 = vector.broadcast %132 : vector<8x1xf32> to vector<8x8xf32>
    %134 = arith.subf %130, %133 : vector<8x8xf32>
    %135 = math.exp %134 : vector<8x8xf32>
    %cst_42 = arith.constant dense<0.000000e+00> : vector<8xf32>
    %136 = vector.multi_reduction <add>, %135, %cst_42 [1] : vector<8x8xf32> to vector<8xf32>
    %137 = vector.shape_cast %136 : vector<8xf32> to vector<8x1xf32>
    %138 = tpu.reciprocal %137 {approx = true} : vector<8x1xf32> -> vector<8x1xf32>
    %139 = vector.broadcast %138 : vector<8x1xf32> to vector<8x8xf32>
    %140 = arith.mulf %135, %139 : vector<8x8xf32>
    %141 = arith.truncf %140 : vector<8x8xf32> to vector<8x8xbf16>
    %cst_43 = arith.constant dense<0.000000e+00> : vector<8x8xf32>
    %142 = tpu.matmul %141, %127, %cst_43 {dimension_numbers = #tpu.dot_dimension_numbers<[1], [0], [0], [1], [0, 0, 1, 1], [], []>} : vector<8x8xbf16>, vector<8x8xbf16>, vector<8x8xf32> -> vector<8x8xf32>
    %143 = arith.truncf %142 : vector<8x8xf32> to vector<8x8xbf16>
    %144 = vector.extract_strided_slice %37 {offsets = [24, 0], sizes = [8, 32], strides = [1, 1]} : vector<32x32xbf16> to vector<8x32xbf16>
    %cst_44 = arith.constant dense<0.000000e+00> : vector<8x32xf32>
    %145 = tpu.matmul %143, %144, %cst_44 {dimension_numbers = #tpu.dot_dimension_numbers<[1], [0], [0], [1], [0, 0, 1, 1], [], []>} : vector<8x8xbf16>, vector<8x32xbf16>, vector<8x32xf32> -> vector<8x32xf32>
    %146 = arith.addf %119, %145 : vector<8x32xf32>
    %c0_45 = arith.constant 0 : index
    %c0_46 = arith.constant 0 : index
    %147 = vector.load %arg8[%c0_45, %c0_46] : memref<1x32xf32, #tpu.memory_space<vmem>>, vector<1x32xf32>
    %148 = vector.broadcast %147 : vector<1x32xf32> to vector<8x32xf32>
    %149 = arith.addf %146, %148 : vector<8x32xf32>
    %150 = arith.addf %1, %149 : vector<8x32xf32>
    %151 = arith.addf %150, %27 : vector<8x32xf32>
    %c0_47 = arith.constant 0 : index
    %c0_48 = arith.constant 0 : index
    %152 = vector.load %arg9[%c0_47, %c0_48] : memref<1x32xf32, #tpu.memory_space<vmem>>, vector<1x32xf32>
    %c0_49 = arith.constant 0 : index
    %c0_50 = arith.constant 0 : index
    %153 = vector.load %arg10[%c0_49, %c0_50] : memref<1x32xf32, #tpu.memory_space<vmem>>, vector<1x32xf32>
    %cst_51 = arith.constant dense<0.000000e+00> : vector<8xf32>
    %154 = vector.multi_reduction <add>, %151, %cst_51 [1] : vector<8x32xf32> to vector<8xf32>
    %155 = vector.shape_cast %154 : vector<8xf32> to vector<8x1xf32>
    %cst_52 = arith.constant 3.200000e+01 : f32
    %156 = vector.broadcast %cst_52 : f32 to vector<8x1xf32>
    %157 = arith.divf %155, %156 : vector<8x1xf32>
    %158 = vector.broadcast %157 : vector<8x1xf32> to vector<8x32xf32>
    %159 = arith.subf %151, %158 : vector<8x32xf32>
    %160 = arith.mulf %159, %159 : vector<8x32xf32>
    %cst_53 = arith.constant dense<0.000000e+00> : vector<8xf32>
    %161 = vector.multi_reduction <add>, %160, %cst_53 [1] : vector<8x32xf32> to vector<8xf32>
    %162 = vector.shape_cast %161 : vector<8xf32> to vector<8x1xf32>
    %cst_54 = arith.constant 3.200000e+01 : f32
    %163 = vector.broadcast %cst_54 : f32 to vector<8x1xf32>
    %164 = arith.divf %162, %163 : vector<8x1xf32>
    %165 = vector.broadcast %157 : vector<8x1xf32> to vector<8x32xf32>
    %166 = arith.subf %151, %165 : vector<8x32xf32>
    %cst_55 = arith.constant 9.99999974E-6 : f32
    %167 = vector.broadcast %cst_55 : f32 to vector<8x1xf32>
    %168 = arith.addf %164, %167 : vector<8x1xf32>
    %169 = math.rsqrt %168 : vector<8x1xf32>
    %170 = vector.broadcast %169 : vector<8x1xf32> to vector<8x32xf32>
    %171 = arith.mulf %166, %170 : vector<8x32xf32>
    %172 = vector.broadcast %152 : vector<1x32xf32> to vector<8x32xf32>
    %173 = arith.mulf %171, %172 : vector<8x32xf32>
    %174 = vector.broadcast %153 : vector<1x32xf32> to vector<8x32xf32>
    %175 = arith.addf %173, %174 : vector<8x32xf32>
    %176 = arith.truncf %175 : vector<8x32xf32> to vector<8x32xbf16>
    %c0_56 = arith.constant 0 : index
    %c0_57 = arith.constant 0 : index
    %177 = vector.load %arg11[%c0_56, %c0_57] : memref<32x128xbf16, #tpu.memory_space<vmem>>, vector<32x128xbf16>
    %cst_58 = arith.constant dense<0.000000e+00> : vector<8x128xf32>
    %178 = tpu.matmul %176, %177, %cst_58 {dimension_numbers = #tpu.dot_dimension_numbers<[1], [0], [0], [1], [0, 0, 1, 1], [], []>} : vector<8x32xbf16>, vector<32x128xbf16>, vector<8x128xf32> -> vector<8x128xf32>
    %c0_59 = arith.constant 0 : index
    %c0_60 = arith.constant 0 : index
    %179 = vector.load %arg12[%c0_59, %c0_60] : memref<1x128xf32, #tpu.memory_space<vmem>>, vector<1x128xf32>
    %180 = vector.broadcast %179 : vector<1x128xf32> to vector<8x128xf32>
    %181 = arith.addf %178, %180 : vector<8x128xf32>
    %cst_61 = arith.constant 5.000000e-01 : f32
    %182 = vector.broadcast %cst_61 : f32 to vector<8x128xf32>
    %183 = arith.mulf %182, %181 : vector<8x128xf32>
    %cst_62 = arith.constant 4.471500e-02 : f32
    %184 = vector.broadcast %cst_62 : f32 to vector<8x128xf32>
    %185 = arith.mulf %184, %181 : vector<8x128xf32>
    %186 = arith.mulf %185, %181 : vector<8x128xf32>
    %187 = arith.mulf %186, %181 : vector<8x128xf32>
    %188 = arith.addf %181, %187 : vector<8x128xf32>
    %cst_63 = arith.constant 0.797884583 : f32
    %189 = vector.broadcast %cst_63 : f32 to vector<8x128xf32>
    %190 = arith.mulf %189, %188 : vector<8x128xf32>
    %191 = math.tanh %190 : vector<8x128xf32>
    %cst_64 = arith.constant 1.000000e+00 : f32
    %192 = vector.broadcast %cst_64 : f32 to vector<8x128xf32>
    %193 = arith.addf %192, %191 : vector<8x128xf32>
    %194 = arith.mulf %183, %193 : vector<8x128xf32>
    %195 = arith.truncf %194 : vector<8x128xf32> to vector<8x128xbf16>
    %c0_65 = arith.constant 0 : index
    %c0_66 = arith.constant 0 : index
    %196 = vector.load %arg13[%c0_65, %c0_66] : memref<128x32xbf16, #tpu.memory_space<vmem>>, vector<128x32xbf16>
    %cst_67 = arith.constant dense<0.000000e+00> : vector<8x32xf32>
    %197 = tpu.matmul %195, %196, %cst_67 {dimension_numbers = #tpu.dot_dimension_numbers<[1], [0], [0], [1], [0, 0, 1, 1], [], []>} : vector<8x128xbf16>, vector<128x32xbf16>, vector<8x32xf32> -> vector<8x32xf32>
    %c0_68 = arith.constant 0 : index
    %c0_69 = arith.constant 0 : index
    %198 = vector.load %arg14[%c0_68, %c0_69] : memref<1x32xf32, #tpu.memory_space<vmem>>, vector<1x32xf32>
    %199 = vector.broadcast %198 : vector<1x32xf32> to vector<8x32xf32>
    %200 = arith.addf %197, %199 : vector<8x32xf32>
    %201 = arith.addf %151, %200 : vector<8x32xf32>
    %c0_70 = arith.constant 0 : index
    %c0_71 = arith.constant 0 : index
    %c0_72 = arith.constant 0 : index
    %202 = vector.load %arg15[%c0_70, %c0_71, %c0_72] : memref<1x8x32xf32, #tpu.memory_space<vmem>>, vector<1x8x32xf32>
    %203 = vector.shape_cast %202 : vector<1x8x32xf32> to vector<8x32xf32>
    %204 = vector.shape_cast %201 : vector<8x32xf32> to vector<1x8x32xf32>
    tpu.vector_store %arg15[%c0_70, %c0_71, %c0_72], %204 {strides = array<i32>} : memref<1x8x32xf32, #tpu.memory_space<vmem>>, vector<1x8x32xf32>,
    return
  }
  func.func @transform_0(%arg0: i32) -> (i32, i32, i32) {
    %c0_i32 = arith.constant 0 : i32
    %c0_i32_0 = arith.constant 0 : i32
    %c0_i32_1 = arith.constant 0 : i32
    return %arg0, %c0_i32, %c0_i32_0 : i32, i32, i32
  }
  func.func @transform_1(%arg0: i32) -> (i32, i32, i32) {
    %c0_i32 = arith.constant 0 : i32
    %c0_i32_0 = arith.constant 0 : i32
    %c0_i32_1 = arith.constant 0 : i32
    return %arg0, %c0_i32, %c0_i32_0 : i32, i32, i32
  }
  func.func @transform_2(%arg0: i32) -> (i32, i32) {
    %c0_i32 = arith.constant 0 : i32
    %c0_i32_0 = arith.constant 0 : i32
    %c0_i32_1 = arith.constant 0 : i32
    return %c0_i32, %c0_i32_0 : i32, i32
  }
  func.func @transform_3(%arg0: i32) -> (i32, i32) {
    %c0_i32 = arith.constant 0 : i32
    %c0_i32_0 = arith.constant 0 : i32
    %c0_i32_1 = arith.constant 0 : i32
    return %c0_i32, %c0_i32_0 : i32, i32
  }
  func.func @transform_4(%arg0: i32) -> (i32, i32) {
    %c0_i32 = arith.constant 0 : i32
    %c0_i32_0 = arith.constant 0 : i32
    %c0_i32_1 = arith.constant 0 : i32
    return %c0_i32, %c0_i32_0 : i32, i32
  }
  func.func @transform_5(%arg0: i32) -> (i32, i32) {
    %c0_i32 = arith.constant 0 : i32
    %c0_i32_0 = arith.constant 0 : i32
    %c0_i32_1 = arith.constant 0 : i32
    return %c0_i32, %c0_i32_0 : i32, i32
  }
  func.func @transform_6(%arg0: i32) -> (i32, i32) {
    %c0_i32 = arith.constant 0 : i32
    %c0_i32_0 = arith.constant 0 : i32
    %c0_i32_1 = arith.constant 0 : i32
    return %c0_i32, %c0_i32_0 : i32, i32
  }
  func.func @transform_7(%arg0: i32) -> (i32, i32) {
    %c0_i32 = arith.constant 0 : i32
    %c0_i32_0 = arith.constant 0 : i32
    %c0_i32_1 = arith.constant 0 : i32
    return %c0_i32, %c0_i32_0 : i32, i32
  }
  func.func @transform_8(%arg0: i32) -> (i32, i32) {
    %c0_i32 = arith.constant 0 : i32
    %c0_i32_0 = arith.constant 0 : i32
    %c0_i32_1 = arith.constant 0 : i32
    return %c0_i32, %c0_i32_0 : i32, i32
  }
  func.func @transform_9(%arg0: i32) -> (i32, i32) {
    %c0_i32 = arith.constant 0 : i32
    %c0_i32_0 = arith.constant 0 : i32
    %c0_i32_1 = arith.constant 0 : i32
    return %c0_i32, %c0_i32_0 : i32, i32
  }
  func.func @transform_10(%arg0: i32) -> (i32, i32) {
    %c0_i32 = arith.constant 0 : i32
    %c0_i32_0 = arith.constant 0 : i32
    %c0_i32_1 = arith.constant 0 : i32
    return %c0_i32, %c0_i32_0 : i32, i32
  }
  func.func @transform_11(%arg0: i32) -> (i32, i32) {
    %c0_i32 = arith.constant 0 : i32
    %c0_i32_0 = arith.constant 0 : i32
    %c0_i32_1 = arith.constant 0 : i32
    return %c0_i32, %c0_i32_0 : i32, i32
  }
  func.func @transform_12(%arg0: i32) -> (i32, i32) {
    %c0_i32 = arith.constant 0 : i32
    %c0_i32_0 = arith.constant 0 : i32
    %c0_i32_1 = arith.constant 0 : i32
    return %c0_i32, %c0_i32_0 : i32, i32
  }
  func.func @transform_13(%arg0: i32) -> (i32, i32) {
    %c0_i32 = arith.constant 0 : i32
    %c0_i32_0 = arith.constant 0 : i32
    %c0_i32_1 = arith.constant 0 : i32
    return %c0_i32, %c0_i32_0 : i32, i32
  }
  func.func @transform_14(%arg0: i32) -> (i32, i32, i32) {
    %c0_i32 = arith.constant 0 : i32
    %c0_i32_0 = arith.constant 0 : i32
    %c0_i32_1 = arith.constant 0 : i32
    return %arg0, %c0_i32, %c0_i32_0 : i32, i32, i32
  }
}

module attributes {stable_mosaic.version = 11 : i64} {
  func.func @lm_head_kernel(%arg0: i32, %arg1: i32, %arg2: memref<1x8x32xf32, #tpu.memory_space<vmem>>, %arg3: memref<1x32xf32, #tpu.memory_space<vmem>>, %arg4: memref<1x32xf32, #tpu.memory_space<vmem>>, %arg5: memref<128x32xbf16, #tpu.memory_space<vmem>>, %arg6: memref<1x8x128xf32, #tpu.memory_space<vmem>>) attributes {dimension_semantics = [#tpu.dimension_semantics<parallel>, #tpu.dimension_semantics<parallel>], iteration_bounds = array<i64: 2, 2>, scalar_prefetch = 0 : i64, scratch_operands = 0 : i64, tpu.core_type = #tpu.core_type<tc>, window_params = [{transform_indices = @transform_0, window_bounds = array<i64: 1, 8, 32>}, {pipeline_mode = #tpu.pipeline_mode<synchronous>, transform_indices = @transform_1, window_bounds = array<i64: 1, 32>}, {pipeline_mode = #tpu.pipeline_mode<synchronous>, transform_indices = @transform_2, window_bounds = array<i64: 1, 32>}, {transform_indices = @transform_3, window_bounds = array<i64: 128, 32>}, {transform_indices = @transform_4, window_bounds = array<i64: 1, 8, 128>}]} {
    %c0 = arith.constant 0 : index
    %c0_0 = arith.constant 0 : index
    %c0_1 = arith.constant 0 : index
    %0 = vector.load %arg2[%c0, %c0_0, %c0_1] : memref<1x8x32xf32, #tpu.memory_space<vmem>>, vector<1x8x32xf32>
    %1 = vector.shape_cast %0 : vector<1x8x32xf32> to vector<8x32xf32>
    %c0_2 = arith.constant 0 : index
    %c0_3 = arith.constant 0 : index
    %2 = vector.load %arg3[%c0_2, %c0_3] : memref<1x32xf32, #tpu.memory_space<vmem>>, vector<1x32xf32>
    %c0_4 = arith.constant 0 : index
    %c0_5 = arith.constant 0 : index
    %3 = vector.load %arg4[%c0_4, %c0_5] : memref<1x32xf32, #tpu.memory_space<vmem>>, vector<1x32xf32>
    %cst = arith.constant dense<0.000000e+00> : vector<8xf32>
    %4 = vector.multi_reduction <add>, %1, %cst [1] : vector<8x32xf32> to vector<8xf32>
    %5 = vector.shape_cast %4 : vector<8xf32> to vector<8x1xf32>
    %cst_6 = arith.constant 3.200000e+01 : f32
    %6 = vector.broadcast %cst_6 : f32 to vector<8x1xf32>
    %7 = arith.divf %5, %6 : vector<8x1xf32>
    %8 = vector.broadcast %7 : vector<8x1xf32> to vector<8x32xf32>
    %9 = arith.subf %1, %8 : vector<8x32xf32>
    %10 = arith.mulf %9, %9 : vector<8x32xf32>
    %cst_7 = arith.constant dense<0.000000e+00> : vector<8xf32>
    %11 = vector.multi_reduction <add>, %10, %cst_7 [1] : vector<8x32xf32> to vector<8xf32>
    %12 = vector.shape_cast %11 : vector<8xf32> to vector<8x1xf32>
    %cst_8 = arith.constant 3.200000e+01 : f32
    %13 = vector.broadcast %cst_8 : f32 to vector<8x1xf32>
    %14 = arith.divf %12, %13 : vector<8x1xf32>
    %15 = vector.broadcast %7 : vector<8x1xf32> to vector<8x32xf32>
    %16 = arith.subf %1, %15 : vector<8x32xf32>
    %cst_9 = arith.constant 9.99999974E-6 : f32
    %17 = vector.broadcast %cst_9 : f32 to vector<8x1xf32>
    %18 = arith.addf %14, %17 : vector<8x1xf32>
    %19 = math.rsqrt %18 : vector<8x1xf32>
    %20 = vector.broadcast %19 : vector<8x1xf32> to vector<8x32xf32>
    %21 = arith.mulf %16, %20 : vector<8x32xf32>
    %22 = vector.broadcast %2 : vector<1x32xf32> to vector<8x32xf32>
    %23 = arith.mulf %21, %22 : vector<8x32xf32>
    %24 = vector.broadcast %3 : vector<1x32xf32> to vector<8x32xf32>
    %25 = arith.addf %23, %24 : vector<8x32xf32>
    %26 = arith.truncf %25 : vector<8x32xf32> to vector<8x32xbf16>
    %c0_10 = arith.constant 0 : index
    %c0_11 = arith.constant 0 : index
    %27 = vector.load %arg5[%c0_10, %c0_11] : memref<128x32xbf16, #tpu.memory_space<vmem>>, vector<128x32xbf16>
    %cst_12 = arith.constant dense<0.000000e+00> : vector<8x128xf32>
    %28 = tpu.matmul %26, %27, %cst_12 {dimension_numbers = #tpu.dot_dimension_numbers<[1], [1], [0], [0], [0, 0, 1, 0], [], []>} : vector<8x32xbf16>, vector<128x32xbf16>, vector<8x128xf32> -> vector<8x128xf32>
    %c0_13 = arith.constant 0 : index
    %c0_14 = arith.constant 0 : index
    %c0_15 = arith.constant 0 : index
    %29 = vector.load %arg6[%c0_13, %c0_14, %c0_15] : memref<1x8x128xf32, #tpu.memory_space<vmem>>, vector<1x8x128xf32>
    %30 = vector.shape_cast %29 : vector<1x8x128xf32> to vector<8x128xf32>
    %31 = vector.shape_cast %28 : vector<8x128xf32> to vector<1x8x128xf32>
    tpu.vector_store %arg6[%c0_13, %c0_14, %c0_15], %31 {strides = array<i32>} : memref<1x8x128xf32, #tpu.memory_space<vmem>>, vector<1x8x128xf32>,
    return
  }
  func.func @transform_0(%arg0: i32, %arg1: i32) -> (i32, i32, i32) {
    %c0_i32 = arith.constant 0 : i32
    %c0_i32_0 = arith.constant 0 : i32
    %c0_i32_1 = arith.constant 0 : i32
    return %arg0, %c0_i32, %c0_i32_0 : i32, i32, i32
  }
  func.func @transform_1(%arg0: i32, %arg1: i32) -> (i32, i32) {
    %c0_i32 = arith.constant 0 : i32
    %c0_i32_0 = arith.constant 0 : i32
    %c0_i32_1 = arith.constant 0 : i32
    return %c0_i32, %c0_i32_0 : i32, i32
  }
  func.func @transform_2(%arg0: i32, %arg1: i32) -> (i32, i32) {
    %c0_i32 = arith.constant 0 : i32
    %c0_i32_0 = arith.constant 0 : i32
    %c0_i32_1 = arith.constant 0 : i32
    return %c0_i32, %c0_i32_0 : i32, i32
  }
  func.func @transform_3(%arg0: i32, %arg1: i32) -> (i32, i32) {
    %c0_i32 = arith.constant 0 : i32
    %c0_i32_0 = arith.constant 0 : i32
    return %arg1, %c0_i32 : i32, i32
  }
  func.func @transform_4(%arg0: i32, %arg1: i32) -> (i32, i32, i32) {
    %c0_i32 = arith.constant 0 : i32
    %c0_i32_0 = arith.constant 0 : i32
    return %arg0, %c0_i32, %arg1 : i32, i32, i32
  }
}

</mosaic_0001>

<llo_original>
// kernel: transformer_forward.5
$region0: #{transformer_forward.5}
  #allocation0 [shape = 'u32[]', space=smem, size = 0x4, offset = 0x4, fixed_abs, tag = 'smem constant byte address 0x4 - core index']
  #allocation1 [shape = 'u32[144,128]{1,0:T(1,128)}', space=vmem, size = 0x12000, scoped, tag = 'internal scratch']
  %s0 = inlined_call_operand.vmem [shape: f32[2,8,32], index: 0, kind: input, shape index: {}]
  %s1 = inlined_call_operand.vmem [shape: f32[1,32], index: 1, kind: input, shape index: {}]
  %s2 = inlined_call_operand.vmem [shape: f32[1,32], index: 2, kind: input, shape index: {}]
  %s3 = inlined_call_operand.vmem [shape: bf16[256,32], index: 3, kind: input, shape index: {}]
  %s4 = inlined_call_operand.hbm [shape: f32[2,8,256], index: 4, kind: output, shape index: {}]
  %s5 = sld [smem:[#allocation0]]
  $region49: #{transformer_forward.5} parent=0
    _
  %s7 = ssub.s32 1, %s5
  %s8 = scalar_select 0, %s7, %s5
  $region1: #{transformer_forward.5} parent=0
    #allocation2 [shape = 'u8[8192]{0}', space=vmem, size = 0x2000, scoped, tag = 'output window, operand 0']
    #allocation3 [shape = 's32[2]{0}', space=sflag, size = 0x8, scoped, tag = 'scoped memory for transformer_forward.5']
    %9 = vsyncpa [#allocation3], 0
    %s10 = scalar_lea.sflag [#allocation3], 1
    %11 = vsyncpa %s10, 0
    loop: start=0, step=1, limit=6
    $region2: #{transformer_forward.5} parent=1 // loop_pre_header
      _
    $region3: #{transformer_forward.5} parent=1 // loop_header
      %s13 = sphi 0, %s17
      %p14 = scmp.ge.s32.totalorder %s13, 6
      %s20 = sphi 0, %s32
      %s21 = sphi 0, %s28
      %s22 = sphi 0, %s20
      %s23 = sphi 0, %s21
      %s24 = sphi 0, %s22
      %s25 = sphi 0, %s23
      %s35 = sphi 0, %s37
      %s38 = sphi 0, %s35
      %s39 = sphi 0, %s38
      %s55 = sphi 0, %s39
      %s59 = sphi 0, %s59
      %s61 = sphi 0, %s59
      %s62 = sphi 0, %s61
      %s76 = sphi 0, %s62
      %s80 = sphi 0, %s80
      %s82 = sphi 0, %s80
      %s83 = sphi 0, %s82
      %s97 = sphi 0, %s83
      %s103 = sphi 0, %s105
      %s106 = sphi 0, %s103
      %s107 = sphi 0, %s106
      %s123 = sphi 0, %s107
      %s131 = sphi 0, %s133
      %s134 = sphi 0, %s131
      %s135 = sphi 0, %s134
      %s151 = sphi 0, %s135
    $region4: #{transformer_forward.5} parent=1 // loop_header_branch
      %16 = sbr.rel (%p14) target = $region8
    $region5: #{transformer_forward.5} parent=1 // loop_body
      %s18 = ssub.s32 %s13, 1
      %s19 = ssub.s32 %s13, 2
      %s26 = sadd.s32 1, %s21
      %p27 = scmp.ge.s32.totalorder %s26, 2
      %s28 = scalar_select %p27, 0, %s26
      %s29 = sadd.s32 1, %s20
      %s30 = scalar_select %p27, %s29, %s20
      %p31 = scmp.ge.s32.totalorder %s30, 2
      %s32 = scalar_select %p31, 0, %s30
      %s33 = ssub.s32 %s20, %s32
      %p34 = scmp.eq.s32.totalorder %s33, 0
      %s36 = sadd.s32 %s35, 1
      %s37 = scalar_select %p34, %s35, %s36
      %p40 = pneg %p34
      %p41 = scmp.eq.s32.totalorder %s13, 3
      %p42 = por %p40, %p41
      %p43 = scmp.ne.s32.totalorder %s35, %s38
      %p44 = scmp.eq.s32.totalorder %s13, 0
      %p45 = por %p43, %p44
      %p46 = scmp.ne.s32.totalorder %s35, %s38
      %p47 = scmp.eq.s32.totalorder %s18, 3
      %p48 = por %p46, %p47
      %p49 = scmp.ne.s32.totalorder %s38, %s39
      %p50 = scmp.eq.s32.totalorder %s18, 0
      %p51 = por %p49, %p50
      %p52 = scmp.ne.s32.totalorder %s38, %s39
      %p53 = scmp.eq.s32.totalorder %s19, 3
      %p54 = por %p52, %p53
      %p56 = scmp.ne.s32.totalorder %s39, %s55
      %p57 = scmp.eq.s32.totalorder %s19, 0
      %p58 = por %p56, %p57
      %s60 = sadd.s32 %s59, 1
      %p63 = scmp.eq.s32.totalorder %s13, 3
      %p64 = scmp.ne.s32.totalorder %s59, %s61
      %p65 = scmp.eq.s32.totalorder %s13, 0
      %p66 = por %p64, %p65
      %p67 = scmp.ne.s32.totalorder %s59, %s61
      %p68 = scmp.eq.s32.totalorder %s18, 3
      %p69 = por %p67, %p68
      %p70 = scmp.ne.s32.totalorder %s61, %s62
      %p71 = scmp.eq.s32.totalorder %s18, 0
      %p72 = por %p70, %p71
      %p73 = scmp.ne.s32.totalorder %s61, %s62
      %p74 = scmp.eq.s32.totalorder %s19, 3
      %p75 = por %p73, %p74
      %p77 = scmp.ne.s32.totalorder %s62, %s76
      %p78 = scmp.eq.s32.totalorder %s19, 0
      %p79 = por %p77, %p78
      %s81 = sadd.s32 %s80, 1
      %p84 = scmp.eq.s32.totalorder %s13, 3
      %p85 = scmp.ne.s32.totalorder %s80, %s82
      %p86 = scmp.eq.s32.totalorder %s13, 0
      %p87 = por %p85, %p86
      %p88 = scmp.ne.s32.totalorder %s80, %s82
      %p89 = scmp.eq.s32.totalorder %s18, 3
      %p90 = por %p88, %p89
      %p91 = scmp.ne.s32.totalorder %s82, %s83
      %p92 = scmp.eq.s32.totalorder %s18, 0
      %p93 = por %p91, %p92
      %p94 = scmp.ne.s32.totalorder %s82, %s83
      %p95 = scmp.eq.s32.totalorder %s19, 3
      %p96 = por %p94, %p95
      %p98 = scmp.ne.s32.totalorder %s83, %s97
      %p99 = scmp.eq.s32.totalorder %s19, 0
      %p100 = por %p98, %p99
      %s101 = ssub.s32 %s21, %s28
      %p102 = scmp.eq.s32.totalorder %s101, 0
      %s104 = sadd.s32 %s103, 1
      %s105 = scalar_select %p102, %s103, %s104
      %p108 = pneg %p102
      %p109 = scmp.eq.s32.totalorder %s13, 3
      %p110 = por %p108, %p109
      %p111 = scmp.ne.s32.totalorder %s103, %s106
      %p112 = scmp.eq.s32.totalorder %s13, 0
      %p113 = por %p111, %p112
      %p114 = scmp.ne.s32.totalorder %s103, %s106
      %p115 = scmp.eq.s32.totalorder %s18, 3
      %p116 = por %p114, %p115
      %p117 = scmp.ne.s32.totalorder %s106, %s107
      %p118 = scmp.eq.s32.totalorder %s18, 0
      %p119 = por %p117, %p118
      %p120 = scmp.ne.s32.totalorder %s106, %s107
      %p121 = scmp.eq.s32.totalorder %s19, 3
      %p122 = por %p120, %p121
      %p124 = scmp.ne.s32.totalorder %s107, %s123
      %p125 = scmp.eq.s32.totalorder %s19, 0
      %p126 = por %p124, %p125
      %s127 = ssub.s32 %s20, %s32
      %s128 = ssub.s32 %s21, %s28
      %s129 = sor.u32 %s127, %s128
      %p130 = scmp.eq.s32.totalorder %s129, 0
      %s132 = sadd.s32 %s131, 1
      %s133 = scalar_select %p130, %s131, %s132
      %p136 = pneg %p130
      %p137 = scmp.eq.s32.totalorder %s13, 3
      %p138 = por %p136, %p137
      %p139 = scmp.ne.s32.totalorder %s131, %s134
      %p140 = scmp.eq.s32.totalorder %s13, 0
      %p141 = por %p139, %p140
      %p142 = scmp.ne.s32.totalorder %s131, %s134
      %p143 = scmp.eq.s32.totalorder %s18, 3
      %p144 = por %p142, %p143
      %p145 = scmp.ne.s32.totalorder %s134, %s135
      %p146 = scmp.eq.s32.totalorder %s18, 0
      %p147 = por %p145, %p146
      %p148 = scmp.ne.s32.totalorder %s134, %s135
      %p149 = scmp.eq.s32.totalorder %s19, 3
      %p150 = por %p148, %p149
      %p152 = scmp.ne.s32.totalorder %s135, %s151
      %p153 = scmp.eq.s32.totalorder %s19, 0
      %p154 = por %p152, %p153
      %p155 = scmp.le.s32.totalorder 1, %s13
      %p156 = scmp.lt.s32.totalorder %s13, 5
      %p157 = pnand %p155, %p156
      %p158 = pneg %p157
      // Predicated region
      $region9: #{transformer_forward.5} parent=5 // pred_check
        _
      $region10: #{transformer_forward.5} parent=5 // pred_check_branch
        %160 = sbr.rel (%p157) target = $region12
      $region11: #{transformer_forward.5} parent=5 // pred_region
        %s161 = ssub.s32 %s13, 1
        // Predicated region
        $region13: #{transformer_forward.5} parent=11 // pred_check
          %p162 = pneg %p72
        $region14: #{transformer_forward.5} parent=11 // pred_check_branch
          %164 = sbr.rel (%p162) target = $region16
        $region15: #{transformer_forward.5} parent=11 // pred_region
          _
        $region16: #{transformer_forward.5} parent=11 // pred_fallthru
          _
        // Predicated region
        $region17: #{transformer_forward.5} parent=11 // pred_check
          %p165 = pneg %p93
        $region18: #{transformer_forward.5} parent=11 // pred_check_branch
          %167 = sbr.rel (%p165) target = $region20
        $region19: #{transformer_forward.5} parent=11 // pred_region
          _
        $region20: #{transformer_forward.5} parent=11 // pred_fallthru
          _
      $region12: #{transformer_forward.5} parent=5 // pred_fallthru
        _
      %p168 = scmp.lt.s32.totalorder %s13, 4
      // Predicated region
      $region21: #{transformer_forward.5} parent=5 // pred_check
        %p169 = pneg %p168
      $region22: #{transformer_forward.5} parent=5 // pred_check_branch
        %171 = sbr.rel (%p169) target = $region24
      $region23: #{transformer_forward.5} parent=5 // pred_region
        // Predicated region
        $region25: #{transformer_forward.5} parent=23 // pred_check
          %p172 = pneg %p45
        $region26: #{transformer_forward.5} parent=23 // pred_check_branch
          %174 = sbr.rel (%p172) target = $region28
        $region27: #{transformer_forward.5} parent=23 // pred_region
          %p175 = scmp.lt.s32.totalorder %s20, 1
          %s176 = scalar_select %p175, %s20, 1
          %s177 = smul.addr %s176, 8
          %s178 = scalar_lea.vmem %s0, %s177
        $region28: #{transformer_forward.5} parent=23 // pred_fallthru
          _
        // Predicated region
        $region29: #{transformer_forward.5} parent=23 // pred_check
          %p179 = pneg %p113
        $region30: #{transformer_forward.5} parent=23 // pred_check_branch
          %181 = sbr.rel (%p179) target = $region32
        $region31: #{transformer_forward.5} parent=23 // pred_region
          %s182 = smul.u32 16, %s21
          %p183 = scmp.lt.s32.totalorder %s182, 31
          %s184 = scalar_select %p183, %s182, 31
          %s185 = smul.addr %s184, 4
          %s186 = scalar_lea.vmem %s3, %s185
          %s187 = smul.u32 16, %s21
        $region32: #{transformer_forward.5} parent=23 // pred_fallthru
          _
      $region24: #{transformer_forward.5} parent=5 // pred_fallthru
        _
      %p188 = scmp.le.s32.totalorder 1, %s13
      %p189 = scmp.lt.s32.totalorder %s13, 5
      %p190 = pnand %p188, %p189
      %p191 = pneg %p190
      // Predicated region
      $region33: #{transformer_forward.5} parent=5 // pred_check
        _
      $region34: #{transformer_forward.5} parent=5 // pred_check_branch
        %193 = sbr.rel (%p190) target = $region36
      $region35: #{transformer_forward.5} parent=5 // pred_region
        %s194 = ssub.s32 %s13, 1
        %p195 = scmp.lt.s32.totalorder %s22, 1
        %s196 = scalar_select %p195, %s22, 1
        %s197 = smul.addr %s196, 8
        %s198 = scalar_lea.vmem %s0, %s197
        %p199 = pneg %p51
        %p200 = pneg %p48
        %p201 = pneg %p72
        %p202 = pneg %p69
        %p203 = pneg %p93
        %p204 = pneg %p90
        %s205 = smul.u32 16, %s23
        %p206 = scmp.lt.s32.totalorder %s205, 31
        %s207 = scalar_select %p206, %s205, 31
        %s208 = smul.addr %s207, 4
        %s209 = scalar_lea.vmem %s3, %s208
        %p210 = pneg %p119
        %p211 = pneg %p116
        %p212 = pneg %p147
        %p213 = pneg %p144
        %s214 = sand.u32 %s134, 1
        %s215 = scalar_lea.sflag [#allocation3], %s214
        %s216 = sand.u32 %s134, 1
        %s217 = smul.addr %s216, 8
        %s218 = scalar_lea.vmem [#allocation2], %s217
        %p219 = scmp.lt.s32.totalorder %s22, 1
        %s220 = scalar_select %p219, %s22, 1
        %s221 = smul.addr %s220, 8
        %s222 = scalar_lea.vmem %s0, %s221
        %s223 = smul.u32 16, %s23
        %p224 = scmp.lt.s32.totalorder %s223, 31
        %s225 = scalar_select %p224, %s223, 31
        %s226 = smul.addr %s225, 4
        %s227 = scalar_lea.vmem %s3, %s226
        %s228 = smul.u32 16, %s23
        %v230 = vld [vmem:[%s222] sm:$0xff]
        %v231 = vld [vmem:[%s1] sm:$0x1]
        %v232 = vld [vmem:[%s2] sm:$0x1]
        %vm233 = vcmask 261120
        %v234 = vsel %vm233, %v230, 0.0
        %235 = vadd.xlane.f32.xlu0 %v234
        %v236 = vpop.xlane.xlu0 %235
        %v237 = vrcp.pop 32.0
        %v238 = vmul.f32 %v236, %v237
        %v239 = vsub.f32 %v230, %v238
        %v240 = vmul.f32 %v239, %v239
        %v241 = vsel %vm233, %v240, 0.0
        %242 = vadd.xlane.f32.xlu0 %v241
        %v243 = vpop.xlane.xlu0 %242
        %v244 = vmul.f32 %v243, %v237
        %v245 = vadd.f32 %v244, 1e-05
        %v246 = vrsqrt.pop %v245
        %v247 = vmul.f32 %v239, %v246
        %v249 = vlaneseq
        %v250 = vshrl.u32 %v249, 7
        %v251 = vsub.s32 0, %v250
        %v252 = vrot.slane %v231, %v251
        %v254 = vmul.f32 %v247, %v252
        %v256 = vlaneseq
        %v257 = vshrl.u32 %v256, 7
        %v258 = vsub.s32 0, %v257
        %v259 = vrot.slane %v232, %v258
        %v261 = vadd.f32 %v254, %v259
        %v262 = vpack.c.bf16 %v261, %v261
        %v263 = vld [vmem:[%s227] sm:$0xf]
        %v264 = vld [vmem:[%s227 + $0x4] sm:$0xf]
        %v265 = vld [vmem:[%s227 + $0x8] sm:$0xf]
        %v266 = vld [vmem:[%s227 + $0xc] sm:$0xf]
        %v267 = vld [vmem:[%s227 + $0x10] sm:$0xf]
        %v268 = vld [vmem:[%s227 + $0x14] sm:$0xf]
        %v269 = vld [vmem:[%s227 + $0x18] sm:$0xf]
        %v270 = vld [vmem:[%s227 + $0x1c] sm:$0xf]
        %v271 = vld [vmem:[%s227 + $0x20] sm:$0xf]
        %v272 = vld [vmem:[%s227 + $0x24] sm:$0xf]
        %v273 = vld [vmem:[%s227 + $0x28] sm:$0xf]
        %v274 = vld [vmem:[%s227 + $0x2c] sm:$0xf]
        %v275 = vld [vmem:[%s227 + $0x30] sm:$0xf]
        %v276 = vld [vmem:[%s227 + $0x34] sm:$0xf]
        %v277 = vld [vmem:[%s227 + $0x38] sm:$0xf]
        %v278 = vld [vmem:[%s227 + $0x3c] sm:$0xf]
        %v295 = vunpack.c.l.b16 %v263
        %v296 = vunpack.c.l.b16 %v264
        %v297 = vunpack.c.l.b16 %v265
        %v298 = vunpack.c.l.b16 %v266
        %v299 = vunpack.c.l.b16 %v267
        %v300 = vunpack.c.l.b16 %v268
        %v301 = vunpack.c.l.b16 %v269
        %v302 = vunpack.c.l.b16 %v270
        %v303 = vunpack.c.l.b16 %v271
        %v304 = vunpack.c.l.b16 %v272
        %v305 = vunpack.c.l.b16 %v273
        %v306 = vunpack.c.l.b16 %v274
        %v307 = vunpack.c.l.b16 %v275
        %v308 = vunpack.c.l.b16 %v276
        %v309 = vunpack.c.l.b16 %v277
        %v310 = vunpack.c.l.b16 %v278
        %v311 = vpack.c.b16 %v296, %v295
        %v312 = vpack.c.b16 %v298, %v297
        %v313 = vpack.c.b16 %v300, %v299
        %v314 = vpack.c.b16 %v302, %v301
        %v315 = vpack.c.b16 %v304, %v303
        %v316 = vpack.c.b16 %v306, %v305
        %v317 = vpack.c.b16 %v308, %v307
        %v318 = vpack.c.b16 %v310, %v309
        %v320 = vsel %vm233, %v262, 0
        %v323 = vsel %vm233, %v311, 0
        %v326 = vsel %vm233, %v312, 0
        %v329 = vsel %vm233, %v313, 0
        %v332 = vsel %vm233, %v314, 0
        %v335 = vsel %vm233, %v315, 0
        %v338 = vsel %vm233, %v316, 0
        %v341 = vsel %vm233, %v317, 0
        %v344 = vsel %vm233, %v318, 0
        %346 = vmatprep.subr.bf16.mxu0 0
        %347 = vmatpush1.bf16.xpose.msra.mxu0 %v344
        %348 = vmatprep.subr.bf16.mxu0 0
        %349 = vmatpush1.bf16.xpose.msra.mxu0 %v341
        %350 = vmatprep.subr.bf16.mxu0 0
        %351 = vmatpush1.bf16.xpose.msra.mxu0 %v338
        %352 = vmatprep.subr.bf16.mxu0 0
        %353 = vmatpush1.bf16.xpose.msra.mxu0 %v335
        %354 = vmatprep.subr.bf16.mxu0 0
        %355 = vmatpush1.bf16.xpose.msra.mxu0 %v332
        %356 = vmatprep.subr.bf16.mxu0 0
        %357 = vmatpush1.bf16.xpose.msra.mxu0 %v329
        %358 = vmatprep.subr.bf16.mxu0 0
        %359 = vmatpush1.bf16.xpose.msra.mxu0 %v326
        %360 = vmatprep.subr.bf16.mxu0 0
        %361 = vmatpush1.bf16.xpose.msra.mxu0 %v323
        %362 = vmatprep.subr.bf16.mxu0 0
        %363 = vmatpush2.bf16.xpose.msra.mxu0 0
        %364 = vmatprep.subr.bf16.mxu0 0
        %365 = vmatpush2.bf16.xpose.msra.mxu0 0
        %366 = vmatprep.subr.bf16.mxu0 0
        %367 = vmatpush2.bf16.xpose.msra.mxu0 0
        %368 = vmatprep.subr.bf16.mxu0 0
        %369 = vmatpush2.bf16.xpose.msra.mxu0 0
        %370 = vmatprep.subr.bf16.mxu0 0
        %371 = vmatpush2.bf16.xpose.msra.mxu0 0
        %372 = vmatprep.subr.bf16.mxu0 0
        %373 = vmatpush2.bf16.xpose.msra.mxu0 0
        %374 = vmatprep.subr.bf16.mxu0 0
        %375 = vmatpush2.bf16.xpose.msra.mxu0 0
        %376 = vmatprep.subr.bf16.mxu0 0
        %377 = vmatpush2.bf16.xpose.msra.mxu0 0
        %378 = vmatprep.mubr.bf16.mxu0 0
        %379 = vmatmul.mubr.bf16.gmra.mxu0 %v320
        %v380 = vpop.f32.mrf.mxu0
        %v381 = vadd.f32 0.0, %v380
        %v382 = vpop.f32.mrf.mxu0
        %v383 = vpop.f32.mrf.mxu0
        %v384 = vpop.f32.mrf.mxu0
        %385 = vdwg.mxu0
        %386 = vst [vmem:[%s218] sm:$0xff] %v381
        %s387 = sand.u32 %s134, 1
        %s388 = scalar_lea.sflag [#allocation3], %s387
        %s389 = sand.u32 %s134, 1
        %s390 = smul.addr %s389, 8
        %s391 = scalar_lea.vmem [#allocation2], %s390
        // Predicated region
        $region37: #{transformer_forward.5} parent=35 // pred_check
          %p392 = pneg %p144
        $region38: #{transformer_forward.5} parent=35 // pred_check_branch
          %394 = sbr.rel (%p392) target = $region40
        $region39: #{transformer_forward.5} parent=35 // pred_region
          %s396 = ssub.s32 128, 128
          %397 = vsyncadd %s388, %s396
          %s398 = smul.addr %s22, 2
          %s399 = sadd.s32 %s23, %s398
          %s400 = smul.addr %s399, 128
          %s401 = scalar_lea.hbm %s4, %s400
          %s403 = sshll.u32 %s391, 4
          %s404 = int_to_ptr.vmem [resolvable:$true] %s403
          %406 = dma.vmem_to_hbm [thread:$0]  %s404, 128, %s401, %s388
        $region40: #{transformer_forward.5} parent=35 // pred_fallthru
          _
      $region36: #{transformer_forward.5} parent=5 // pred_fallthru
        _
      %p407 = scmp.le.s32.totalorder 2, %s13
      // Predicated region
      $region41: #{transformer_forward.5} parent=5 // pred_check
        %p408 = pneg %p407
      $region42: #{transformer_forward.5} parent=5 // pred_check_branch
        %410 = sbr.rel (%p408) target = $region44
      $region43: #{transformer_forward.5} parent=5 // pred_region
        %s411 = ssub.s32 %s13, 2
        // Predicated region
        $region45: #{transformer_forward.5} parent=43 // pred_check
          %p412 = pneg %p150
        $region46: #{transformer_forward.5} parent=43 // pred_check_branch
          %414 = sbr.rel (%p412) target = $region48
        $region47: #{transformer_forward.5} parent=43 // pred_region
          %s415 = sand.u32 %s135, 1
          %s416 = scalar_lea.sflag [#allocation3], %s415
          %s417 = sand.u32 %s135, 1
          %s418 = smul.addr %s417, 8
          %s419 = scalar_lea.vmem [#allocation2], %s418
          %420 = dma.done %s416, 128
        $region48: #{transformer_forward.5} parent=43 // pred_fallthru
          _
      $region44: #{transformer_forward.5} parent=5 // pred_fallthru
        _
    $region6: #{transformer_forward.5} parent=1 // loop_footer
      %s17 = sadd.s32 1, %s13
    $region7: #{transformer_forward.5} parent=1 // loop_footer_branch
      %12 = sbr.rel target = $region3
    $region8: #{transformer_forward.5} parent=1 // loop_exit
      _
    %421 = vsyncpa [#allocation3], 1
    %s422 = scalar_lea.sflag [#allocation3], 1
    %423 = vsyncpa %s422, 1

// kernel: transformer_forward.3
$region0: #{transformer_forward.3}
  #allocation0 [shape = 'u32[]', space=smem, size = 0x4, offset = 0x4, fixed_abs, tag = 'smem constant byte address 0x4 - core index']
  #allocation1 [shape = 'u32[144,128]{1,0:T(1,128)}', space=vmem, size = 0x12000, scoped, tag = 'internal scratch']
  %s0 = inlined_call_operand.vmem [shape: f32[2,8,32], index: 0, kind: input, shape index: {}]
  %s1 = inlined_call_operand.vmem [shape: f32[2,1,8], index: 1, kind: input, shape index: {}]
  %s2 = inlined_call_operand.vmem [shape: f32[1,32], index: 2, kind: input, shape index: {}]
  %s3 = inlined_call_operand.vmem [shape: f32[1,32], index: 3, kind: input, shape index: {}]
  %s4 = inlined_call_operand.vmem [shape: bf16[32,96], index: 4, kind: input, shape index: {}]
  %s5 = inlined_call_operand.vmem [shape: f32[1,96], index: 5, kind: input, shape index: {}]
  %s6 = inlined_call_operand.vmem [shape: bf16[32,32], index: 6, kind: input, shape index: {}]
  %s7 = inlined_call_operand.vmem [shape: f32[1,32], index: 7, kind: input, shape index: {}]
  %s8 = inlined_call_operand.vmem [shape: f32[1,32], index: 8, kind: input, shape index: {}]
  %s9 = inlined_call_operand.vmem [shape: f32[1,32], index: 9, kind: input, shape index: {}]
  %s10 = inlined_call_operand.vmem [shape: bf16[32,128], index: 10, kind: input, shape index: {}]
  %s11 = inlined_call_operand.vmem [shape: f32[1,128], index: 11, kind: input, shape index: {}]
  %s12 = inlined_call_operand.vmem [shape: bf16[128,32], index: 12, kind: input, shape index: {}]
  %s13 = inlined_call_operand.vmem [shape: f32[1,32], index: 13, kind: input, shape index: {}]
  %s14 = inlined_call_operand.vmem [shape: f32[2,8,32], index: 14, kind: output, shape index: {}]
  %s15 = sld [smem:[#allocation0]]
  $region89: #{transformer_forward.3} parent=0
    _
  %s17 = ssub.s32 1, %s15
  %s18 = scalar_select 0, %s17, %s15
  loop: start=0, step=1, limit=4
  $region2: #{transformer_forward.3} parent=0 // loop_pre_header
    _
  $region3: #{transformer_forward.3} parent=0 // loop_header
    %s20 = sphi 0, %s24
    %p21 = scmp.ge.s32.totalorder %s20, 4
    %s30 = sphi 0, %s32
    %s33 = sphi 0, %s30
    %s34 = sphi 0, %s33
    %s50 = sphi 0, %s34
    %s56 = sphi 0, %s58
    %s59 = sphi 0, %s56
    %s60 = sphi 0, %s59
    %s76 = sphi 0, %s60
    %s80 = sphi 0, %s80
    %s82 = sphi 0, %s80
    %s83 = sphi 0, %s82
    %s97 = sphi 0, %s83
    %s101 = sphi 0, %s101
    %s103 = sphi 0, %s101
    %s104 = sphi 0, %s103
    %s118 = sphi 0, %s104
    %s122 = sphi 0, %s122
    %s124 = sphi 0, %s122
    %s125 = sphi 0, %s124
    %s139 = sphi 0, %s125
    %s143 = sphi 0, %s143
    %s145 = sphi 0, %s143
    %s146 = sphi 0, %s145
    %s160 = sphi 0, %s146
    %s164 = sphi 0, %s164
    %s166 = sphi 0, %s164
    %s167 = sphi 0, %s166
    %s181 = sphi 0, %s167
    %s185 = sphi 0, %s185
    %s187 = sphi 0, %s185
    %s188 = sphi 0, %s187
    %s202 = sphi 0, %s188
    %s206 = sphi 0, %s206
    %s208 = sphi 0, %s206
    %s209 = sphi 0, %s208
    %s223 = sphi 0, %s209
    %s227 = sphi 0, %s227
    %s229 = sphi 0, %s227
    %s230 = sphi 0, %s229
    %s244 = sphi 0, %s230
    %s248 = sphi 0, %s248
    %s250 = sphi 0, %s248
    %s251 = sphi 0, %s250
    %s265 = sphi 0, %s251
    %s269 = sphi 0, %s269
    %s271 = sphi 0, %s269
    %s272 = sphi 0, %s271
    %s286 = sphi 0, %s272
    %s290 = sphi 0, %s290
    %s292 = sphi 0, %s290
    %s293 = sphi 0, %s292
    %s307 = sphi 0, %s293
    %s311 = sphi 0, %s311
    %s313 = sphi 0, %s311
    %s314 = sphi 0, %s313
    %s328 = sphi 0, %s314
    %s334 = sphi 0, %s336
    %s337 = sphi 0, %s334
    %s338 = sphi 0, %s337
    %s354 = sphi 0, %s338
  $region4: #{transformer_forward.3} parent=0 // loop_header_branch
    %23 = sbr.rel (%p21) target = $region8
  $region5: #{transformer_forward.3} parent=0 // loop_body
    %s25 = ssub.s32 %s20, 1
    %s26 = ssub.s32 %s20, 2
    %s27 = sadd.s32 %s20, 1
    %s28 = ssub.s32 %s20, %s27
    %p29 = scmp.eq.s32.totalorder %s28, 0
    %s31 = sadd.s32 %s30, 1
    %s32 = scalar_select %p29, %s30, %s31
    %p35 = pneg %p29
    %p36 = scmp.eq.s32.totalorder %s20, 1
    %p37 = por %p35, %p36
    %p38 = scmp.ne.s32.totalorder %s30, %s33
    %p39 = scmp.eq.s32.totalorder %s20, 0
    %p40 = por %p38, %p39
    %p41 = scmp.ne.s32.totalorder %s30, %s33
    %p42 = scmp.eq.s32.totalorder %s25, 1
    %p43 = por %p41, %p42
    %p44 = scmp.ne.s32.totalorder %s33, %s34
    %p45 = scmp.eq.s32.totalorder %s25, 0
    %p46 = por %p44, %p45
    %p47 = scmp.ne.s32.totalorder %s33, %s34
    %p48 = scmp.eq.s32.totalorder %s26, 1
    %p49 = por %p47, %p48
    %p51 = scmp.ne.s32.totalorder %s34, %s50
    %p52 = scmp.eq.s32.totalorder %s26, 0
    %p53 = por %p51, %p52
    %s54 = ssub.s32 %s20, %s27
    %p55 = scmp.eq.s32.totalorder %s54, 0
    %s57 = sadd.s32 %s56, 1
    %s58 = scalar_select %p55, %s56, %s57
    %p61 = pneg %p55
    %p62 = scmp.eq.s32.totalorder %s20, 1
    %p63 = por %p61, %p62
    %p64 = scmp.ne.s32.totalorder %s56, %s59
    %p65 = scmp.eq.s32.totalorder %s20, 0
    %p66 = por %p64, %p65
    %p67 = scmp.ne.s32.totalorder %s56, %s59
    %p68 = scmp.eq.s32.totalorder %s25, 1
    %p69 = por %p67, %p68
    %p70 = scmp.ne.s32.totalorder %s59, %s60
    %p71 = scmp.eq.s32.totalorder %s25, 0
    %p72 = por %p70, %p71
    %p73 = scmp.ne.s32.totalorder %s59, %s60
    %p74 = scmp.eq.s32.totalorder %s26, 1
    %p75 = por %p73, %p74
    %p77 = scmp.ne.s32.totalorder %s60, %s76
    %p78 = scmp.eq.s32.totalorder %s26, 0
    %p79 = por %p77, %p78
    %s81 = sadd.s32 %s80, 1
    %p84 = scmp.eq.s32.totalorder %s20, 1
    %p85 = scmp.ne.s32.totalorder %s80, %s82
    %p86 = scmp.eq.s32.totalorder %s20, 0
    %p87 = por %p85, %p86
    %p88 = scmp.ne.s32.totalorder %s80, %s82
    %p89 = scmp.eq.s32.totalorder %s25, 1
    %p90 = por %p88, %p89
    %p91 = scmp.ne.s32.totalorder %s82, %s83
    %p92 = scmp.eq.s32.totalorder %s25, 0
    %p93 = por %p91, %p92
    %p94 = scmp.ne.s32.totalorder %s82, %s83
    %p95 = scmp.eq.s32.totalorder %s26, 1
    %p96 = por %p94, %p95
    %p98 = scmp.ne.s32.totalorder %s83, %s97
    %p99 = scmp.eq.s32.totalorder %s26, 0
    %p100 = por %p98, %p99
    %s102 = sadd.s32 %s101, 1
    %p105 = scmp.eq.s32.totalorder %s20, 1
    %p106 = scmp.ne.s32.totalorder %s101, %s103
    %p107 = scmp.eq.s32.totalorder %s20, 0
    %p108 = por %p106, %p107
    %p109 = scmp.ne.s32.totalorder %s101, %s103
    %p110 = scmp.eq.s32.totalorder %s25, 1
    %p111 = por %p109, %p110
    %p112 = scmp.ne.s32.totalorder %s103, %s104
    %p113 = scmp.eq.s32.totalorder %s25, 0
    %p114 = por %p112, %p113
    %p115 = scmp.ne.s32.totalorder %s103, %s104
    %p116 = scmp.eq.s32.totalorder %s26, 1
    %p117 = por %p115, %p116
    %p119 = scmp.ne.s32.totalorder %s104, %s118
    %p120 = scmp.eq.s32.totalorder %s26, 0
    %p121 = por %p119, %p120
    %s123 = sadd.s32 %s122, 1
    %p126 = scmp.eq.s32.totalorder %s20, 1
    %p127 = scmp.ne.s32.totalorder %s122, %s124
    %p128 = scmp.eq.s32.totalorder %s20, 0
    %p129 = por %p127, %p128
    %p130 = scmp.ne.s32.totalorder %s122, %s124
    %p131 = scmp.eq.s32.totalorder %s25, 1
    %p132 = por %p130, %p131
    %p133 = scmp.ne.s32.totalorder %s124, %s125
    %p134 = scmp.eq.s32.totalorder %s25, 0
    %p135 = por %p133, %p134
    %p136 = scmp.ne.s32.totalorder %s124, %s125
    %p137 = scmp.eq.s32.totalorder %s26, 1
    %p138 = por %p136, %p137
    %p140 = scmp.ne.s32.totalorder %s125, %s139
    %p141 = scmp.eq.s32.totalorder %s26, 0
    %p142 = por %p140, %p141
    %s144 = sadd.s32 %s143, 1
    %p147 = scmp.eq.s32.totalorder %s20, 1
    %p148 = scmp.ne.s32.totalorder %s143, %s145
    %p149 = scmp.eq.s32.totalorder %s20, 0
    %p150 = por %p148, %p149
    %p151 = scmp.ne.s32.totalorder %s143, %s145
    %p152 = scmp.eq.s32.totalorder %s25, 1
    %p153 = por %p151, %p152
    %p154 = scmp.ne.s32.totalorder %s145, %s146
    %p155 = scmp.eq.s32.totalorder %s25, 0
    %p156 = por %p154, %p155
    %p157 = scmp.ne.s32.totalorder %s145, %s146
    %p158 = scmp.eq.s32.totalorder %s26, 1
    %p159 = por %p157, %p158
    %p161 = scmp.ne.s32.totalorder %s146, %s160
    %p162 = scmp.eq.s32.totalorder %s26, 0
    %p163 = por %p161, %p162
    %s165 = sadd.s32 %s164, 1
    %p168 = scmp.eq.s32.totalorder %s20, 1
    %p169 = scmp.ne.s32.totalorder %s164, %s166
    %p170 = scmp.eq.s32.totalorder %s20, 0
    %p171 = por %p169, %p170
    %p172 = scmp.ne.s32.totalorder %s164, %s166
    %p173 = scmp.eq.s32.totalorder %s25, 1
    %p174 = por %p172, %p173
    %p175 = scmp.ne.s32.totalorder %s166, %s167
    %p176 = scmp.eq.s32.totalorder %s25, 0
    %p177 = por %p175, %p176
    %p178 = scmp.ne.s32.totalorder %s166, %s167
    %p179 = scmp.eq.s32.totalorder %s26, 1
    %p180 = por %p178, %p179
    %p182 = scmp.ne.s32.totalorder %s167, %s181
    %p183 = scmp.eq.s32.totalorder %s26, 0
    %p184 = por %p182, %p183
    %s186 = sadd.s32 %s185, 1
    %p189 = scmp.eq.s32.totalorder %s20, 1
    %p190 = scmp.ne.s32.totalorder %s185, %s187
    %p191 = scmp.eq.s32.totalorder %s20, 0
    %p192 = por %p190, %p191
    %p193 = scmp.ne.s32.totalorder %s185, %s187
    %p194 = scmp.eq.s32.totalorder %s25, 1
    %p195 = por %p193, %p194
    %p196 = scmp.ne.s32.totalorder %s187, %s188
    %p197 = scmp.eq.s32.totalorder %s25, 0
    %p198 = por %p196, %p197
    %p199 = scmp.ne.s32.totalorder %s187, %s188
    %p200 = scmp.eq.s32.totalorder %s26, 1
    %p201 = por %p199, %p200
    %p203 = scmp.ne.s32.totalorder %s188, %s202
    %p204 = scmp.eq.s32.totalorder %s26, 0
    %p205 = por %p203, %p204
    %s207 = sadd.s32 %s206, 1
    %p210 = scmp.eq.s32.totalorder %s20, 1
    %p211 = scmp.ne.s32.totalorder %s206, %s208
    %p212 = scmp.eq.s32.totalorder %s20, 0
    %p213 = por %p211, %p212
    %p214 = scmp.ne.s32.totalorder %s206, %s208
    %p215 = scmp.eq.s32.totalorder %s25, 1
    %p216 = por %p214, %p215
    %p217 = scmp.ne.s32.totalorder %s208, %s209
    %p218 = scmp.eq.s32.totalorder %s25, 0
    %p219 = por %p217, %p218
    %p220 = scmp.ne.s32.totalorder %s208, %s209
    %p221 = scmp.eq.s32.totalorder %s26, 1
    %p222 = por %p220, %p221
    %p224 = scmp.ne.s32.totalorder %s209, %s223
    %p225 = scmp.eq.s32.totalorder %s26, 0
    %p226 = por %p224, %p225
    %s228 = sadd.s32 %s227, 1
    %p231 = scmp.eq.s32.totalorder %s20, 1
    %p232 = scmp.ne.s32.totalorder %s227, %s229
    %p233 = scmp.eq.s32.totalorder %s20, 0
    %p234 = por %p232, %p233
    %p235 = scmp.ne.s32.totalorder %s227, %s229
    %p236 = scmp.eq.s32.totalorder %s25, 1
    %p237 = por %p235, %p236
    %p238 = scmp.ne.s32.totalorder %s229, %s230
    %p239 = scmp.eq.s32.totalorder %s25, 0
    %p240 = por %p238, %p239
    %p241 = scmp.ne.s32.totalorder %s229, %s230
    %p242 = scmp.eq.s32.totalorder %s26, 1
    %p243 = por %p241, %p242
    %p245 = scmp.ne.s32.totalorder %s230, %s244
    %p246 = scmp.eq.s32.totalorder %s26, 0
    %p247 = por %p245, %p246
    %s249 = sadd.s32 %s248, 1
    %p252 = scmp.eq.s32.totalorder %s20, 1
    %p253 = scmp.ne.s32.totalorder %s248, %s250
    %p254 = scmp.eq.s32.totalorder %s20, 0
    %p255 = por %p253, %p254
    %p256 = scmp.ne.s32.totalorder %s248, %s250
    %p257 = scmp.eq.s32.totalorder %s25, 1
    %p258 = por %p256, %p257
    %p259 = scmp.ne.s32.totalorder %s250, %s251
    %p260 = scmp.eq.s32.totalorder %s25, 0
    %p261 = por %p259, %p260
    %p262 = scmp.ne.s32.totalorder %s250, %s251
    %p263 = scmp.eq.s32.totalorder %s26, 1
    %p264 = por %p262, %p263
    %p266 = scmp.ne.s32.totalorder %s251, %s265
    %p267 = scmp.eq.s32.totalorder %s26, 0
    %p268 = por %p266, %p267
    %s270 = sadd.s32 %s269, 1
    %p273 = scmp.eq.s32.totalorder %s20, 1
    %p274 = scmp.ne.s32.totalorder %s269, %s271
    %p275 = scmp.eq.s32.totalorder %s20, 0
    %p276 = por %p274, %p275
    %p277 = scmp.ne.s32.totalorder %s269, %s271
    %p278 = scmp.eq.s32.totalorder %s25, 1
    %p279 = por %p277, %p278
    %p280 = scmp.ne.s32.totalorder %s271, %s272
    %p281 = scmp.eq.s32.totalorder %s25, 0
    %p282 = por %p280, %p281
    %p283 = scmp.ne.s32.totalorder %s271, %s272
    %p284 = scmp.eq.s32.totalorder %s26, 1
    %p285 = por %p283, %p284
    %p287 = scmp.ne.s32.totalorder %s272, %s286
    %p288 = scmp.eq.s32.totalorder %s26, 0
    %p289 = por %p287, %p288
    %s291 = sadd.s32 %s290, 1
    %p294 = scmp.eq.s32.totalorder %s20, 1
    %p295 = scmp.ne.s32.totalorder %s290, %s292
    %p296 = scmp.eq.s32.totalorder %s20, 0
    %p297 = por %p295, %p296
    %p298 = scmp.ne.s32.totalorder %s290, %s292
    %p299 = scmp.eq.s32.totalorder %s25, 1
    %p300 = por %p298, %p299
    %p301 = scmp.ne.s32.totalorder %s292, %s293
    %p302 = scmp.eq.s32.totalorder %s25, 0
    %p303 = por %p301, %p302
    %p304 = scmp.ne.s32.totalorder %s292, %s293
    %p305 = scmp.eq.s32.totalorder %s26, 1
    %p306 = por %p304, %p305
    %p308 = scmp.ne.s32.totalorder %s293, %s307
    %p309 = scmp.eq.s32.totalorder %s26, 0
    %p310 = por %p308, %p309
    %s312 = sadd.s32 %s311, 1
    %p315 = scmp.eq.s32.totalorder %s20, 1
    %p316 = scmp.ne.s32.totalorder %s311, %s313
    %p317 = scmp.eq.s32.totalorder %s20, 0
    %p318 = por %p316, %p317
    %p319 = scmp.ne.s32.totalorder %s311, %s313
    %p320 = scmp.eq.s32.totalorder %s25, 1
    %p321 = por %p319, %p320
    %p322 = scmp.ne.s32.totalorder %s313, %s314
    %p323 = scmp.eq.s32.totalorder %s25, 0
    %p324 = por %p322, %p323
    %p325 = scmp.ne.s32.totalorder %s313, %s314
    %p326 = scmp.eq.s32.totalorder %s26, 1
    %p327 = por %p325, %p326
    %p329 = scmp.ne.s32.totalorder %s314, %s328
    %p330 = scmp.eq.s32.totalorder %s26, 0
    %p331 = por %p329, %p330
    %s332 = ssub.s32 %s20, %s27
    %p333 = scmp.eq.s32.totalorder %s332, 0
    %s335 = sadd.s32 %s334, 1
    %s336 = scalar_select %p333, %s334, %s335
    %p339 = pneg %p333
    %p340 = scmp.eq.s32.totalorder %s20, 1
    %p341 = por %p339, %p340
    %p342 = scmp.ne.s32.totalorder %s334, %s337
    %p343 = scmp.eq.s32.totalorder %s20, 0
    %p344 = por %p342, %p343
    %p345 = scmp.ne.s32.totalorder %s334, %s337
    %p346 = scmp.eq.s32.totalorder %s25, 1
    %p347 = por %p345, %p346
    %p348 = scmp.ne.s32.totalorder %s337, %s338
    %p349 = scmp.eq.s32.totalorder %s25, 0
    %p350 = por %p348, %p349
    %p351 = scmp.ne.s32.totalorder %s337, %s338
    %p352 = scmp.eq.s32.totalorder %s26, 1
    %p353 = por %p351, %p352
    %p355 = scmp.ne.s32.totalorder %s338, %s354
    %p356 = scmp.eq.s32.totalorder %s26, 0
    %p357 = por %p355, %p356
    %p358 = scmp.le.s32.totalorder 1, %s20
    %p359 = scmp.lt.s32.totalorder %s20, 3
    %p360 = pnand %p358, %p359
    %p361 = pneg %p360
    // Predicated region
    $region9: #{transformer_forward.3} parent=5 // pred_check
      _
    $region10: #{transformer_forward.3} parent=5 // pred_check_branch
      %363 = sbr.rel (%p360) target = $region12
    $region11: #{transformer_forward.3} parent=5 // pred_region
      %s364 = ssub.s32 %s20, 1
      // Predicated region
      $region13: #{transformer_forward.3} parent=11 // pred_check
        %p365 = pneg %p93
      $region14: #{transformer_forward.3} parent=11 // pred_check_branch
        %367 = sbr.rel (%p365) target = $region16
      $region15: #{transformer_forward.3} parent=11 // pred_region
        _
      $region16: #{transformer_forward.3} parent=11 // pred_fallthru
        _
      // Predicated region
      $region17: #{transformer_forward.3} parent=11 // pred_check
        %p368 = pneg %p114
      $region18: #{transformer_forward.3} parent=11 // pred_check_branch
        %370 = sbr.rel (%p368) target = $region20
      $region19: #{transformer_forward.3} parent=11 // pred_region
        _
      $region20: #{transformer_forward.3} parent=11 // pred_fallthru
        _
      // Predicated region
      $region21: #{transformer_forward.3} parent=11 // pred_check
        %p371 = pneg %p135
      $region22: #{transformer_forward.3} parent=11 // pred_check_branch
        %373 = sbr.rel (%p371) target = $region24
      $region23: #{transformer_forward.3} parent=11 // pred_region
        _
      $region24: #{transformer_forward.3} parent=11 // pred_fallthru
        _
      // Predicated region
      $region25: #{transformer_forward.3} parent=11 // pred_check
        %p374 = pneg %p156
      $region26: #{transformer_forward.3} parent=11 // pred_check_branch
        %376 = sbr.rel (%p374) target = $region28
      $region27: #{transformer_forward.3} parent=11 // pred_region
        _
      $region28: #{transformer_forward.3} parent=11 // pred_fallthru
        _
      // Predicated region
      $region29: #{transformer_forward.3} parent=11 // pred_check
        %p377 = pneg %p177
      $region30: #{transformer_forward.3} parent=11 // pred_check_branch
        %379 = sbr.rel (%p377) target = $region32
      $region31: #{transformer_forward.3} parent=11 // pred_region
        _
      $region32: #{transformer_forward.3} parent=11 // pred_fallthru
        _
      // Predicated region
      $region33: #{transformer_forward.3} parent=11 // pred_check
        %p380 = pneg %p198
      $region34: #{transformer_forward.3} parent=11 // pred_check_branch
        %382 = sbr.rel (%p380) target = $region36
      $region35: #{transformer_forward.3} parent=11 // pred_region
        _
      $region36: #{transformer_forward.3} parent=11 // pred_fallthru
        _
      // Predicated region
      $region37: #{transformer_forward.3} parent=11 // pred_check
        %p383 = pneg %p219
      $region38: #{transformer_forward.3} parent=11 // pred_check_branch
        %385 = sbr.rel (%p383) target = $region40
      $region39: #{transformer_forward.3} parent=11 // pred_region
        _
      $region40: #{transformer_forward.3} parent=11 // pred_fallthru
        _
      // Predicated region
      $region41: #{transformer_forward.3} parent=11 // pred_check
        %p386 = pneg %p240
      $region42: #{transformer_forward.3} parent=11 // pred_check_branch
        %388 = sbr.rel (%p386) target = $region44
      $region43: #{transformer_forward.3} parent=11 // pred_region
        _
      $region44: #{transformer_forward.3} parent=11 // pred_fallthru
        _
      // Predicated region
      $region45: #{transformer_forward.3} parent=11 // pred_check
        %p389 = pneg %p261
      $region46: #{transformer_forward.3} parent=11 // pred_check_branch
        %391 = sbr.rel (%p389) target = $region48
      $region47: #{transformer_forward.3} parent=11 // pred_region
        _
      $region48: #{transformer_forward.3} parent=11 // pred_fallthru
        _
      // Predicated region
      $region49: #{transformer_forward.3} parent=11 // pred_check
        %p392 = pneg %p282
      $region50: #{transformer_forward.3} parent=11 // pred_check_branch
        %394 = sbr.rel (%p392) target = $region52
      $region51: #{transformer_forward.3} parent=11 // pred_region
        _
      $region52: #{transformer_forward.3} parent=11 // pred_fallthru
        _
      // Predicated region
      $region53: #{transformer_forward.3} parent=11 // pred_check
        %p395 = pneg %p303
      $region54: #{transformer_forward.3} parent=11 // pred_check_branch
        %397 = sbr.rel (%p395) target = $region56
      $region55: #{transformer_forward.3} parent=11 // pred_region
        _
      $region56: #{transformer_forward.3} parent=11 // pred_fallthru
        _
      // Predicated region
      $region57: #{transformer_forward.3} parent=11 // pred_check
        %p398 = pneg %p324
      $region58: #{transformer_forward.3} parent=11 // pred_check_branch
        %400 = sbr.rel (%p398) target = $region60
      $region59: #{transformer_forward.3} parent=11 // pred_region
        _
      $region60: #{transformer_forward.3} parent=11 // pred_fallthru
        _
    $region12: #{transformer_forward.3} parent=5 // pred_fallthru
      _
    %p401 = scmp.lt.s32.totalorder %s20, 2
    // Predicated region
    $region61: #{transformer_forward.3} parent=5 // pred_check
      %p402 = pneg %p401
    $region62: #{transformer_forward.3} parent=5 // pred_check_branch
      %404 = sbr.rel (%p402) target = $region64
    $region63: #{transformer_forward.3} parent=5 // pred_region
      // Predicated region
      $region65: #{transformer_forward.3} parent=63 // pred_check
        %p405 = pneg %p40
      $region66: #{transformer_forward.3} parent=63 // pred_check_branch
        %407 = sbr.rel (%p405) target = $region68
      $region67: #{transformer_forward.3} parent=63 // pred_region
        %p408 = scmp.lt.s32.totalorder %s20, 1
        %s409 = scalar_select %p408, %s20, 1
        %s410 = smul.addr %s409, 8
        %s411 = scalar_lea.vmem %s0, %s410
      $region68: #{transformer_forward.3} parent=63 // pred_fallthru
        _
      // Predicated region
      $region69: #{transformer_forward.3} parent=63 // pred_check
        %p412 = pneg %p66
      $region70: #{transformer_forward.3} parent=63 // pred_check_branch
        %414 = sbr.rel (%p412) target = $region72
      $region71: #{transformer_forward.3} parent=63 // pred_region
        %p415 = scmp.lt.s32.totalorder %s20, 1
        %s416 = scalar_select %p415, %s20, 1
        %s417 = scalar_lea.vmem %s1, %s416
      $region72: #{transformer_forward.3} parent=63 // pred_fallthru
        _
    $region64: #{transformer_forward.3} parent=5 // pred_fallthru
      _
    %p418 = scmp.le.s32.totalorder 1, %s20
    %p419 = scmp.lt.s32.totalorder %s20, 3
    %p420 = pnand %p418, %p419
    %p421 = pneg %p420
    // Predicated region
    $region73: #{transformer_forward.3} parent=5 // pred_check
      _
    $region74: #{transformer_forward.3} parent=5 // pred_check_branch
      %423 = sbr.rel (%p420) target = $region76
    $region75: #{transformer_forward.3} parent=5 // pred_region
      %s424 = ssub.s32 %s20, 1
      %p425 = scmp.lt.s32.totalorder %s25, 1
      %s426 = scalar_select %p425, %s25, 1
      %s427 = smul.addr %s426, 8
      %s428 = scalar_lea.vmem %s0, %s427
      %p429 = pneg %p46
      %p430 = pneg %p43
      %p431 = scmp.lt.s32.totalorder %s25, 1
      %s432 = scalar_select %p431, %s25, 1
      %s433 = scalar_lea.vmem %s1, %s432
      %p434 = pneg %p72
      %p435 = pneg %p69
      %p436 = pneg %p93
      %p437 = pneg %p90
      %p438 = pneg %p114
      %p439 = pneg %p111
      %p440 = pneg %p135
      %p441 = pneg %p132
      %p442 = pneg %p156
      %p443 = pneg %p153
      %p444 = pneg %p177
      %p445 = pneg %p174
      %p446 = pneg %p198
      %p447 = pneg %p195
      %p448 = pneg %p219
      %p449 = pneg %p216
      %p450 = pneg %p240
      %p451 = pneg %p237
      %p452 = pneg %p261
      %p453 = pneg %p258
      %p454 = pneg %p282
      %p455 = pneg %p279
      %p456 = pneg %p303
      %p457 = pneg %p300
      %p458 = pneg %p324
      %p459 = pneg %p321
      %p460 = pneg %p350
      %p461 = pneg %p347
      %p462 = scmp.lt.s32.totalorder %s25, 1
      %s463 = scalar_select %p462, %s25, 1
      %s464 = smul.addr %s463, 8
      %s465 = scalar_lea.vmem %s14, %s464
      %p466 = scmp.lt.s32.totalorder %s25, 1
      %s467 = scalar_select %p466, %s25, 1
      %s468 = smul.addr %s467, 8
      %s469 = scalar_lea.vmem %s0, %s468
      %p470 = scmp.lt.s32.totalorder %s25, 1
      %s471 = scalar_select %p470, %s25, 1
      %s472 = scalar_lea.vmem %s1, %s471
      %p473 = scmp.lt.s32.totalorder %s25, 1
      %s474 = scalar_select %p473, %s25, 1
      %s475 = smul.addr %s474, 8
      %s476 = scalar_lea.vmem %s14, %s475
      %v478 = vld [vmem:[%s469] sm:$0xff]
      %v479 = vld [vmem:[%s472] sm:$0x1]
      %v480 = vld [vmem:[%s2] sm:$0x1]
      %v481 = vld [vmem:[%s3] sm:$0x1]
      %vm482 = vcmask 261120
      %v483 = vsel %vm482, %v478, 0.0
      %484 = vadd.xlane.f32.xlu0 %v483
      %v485 = vpop.xlane.xlu0 %484
      %v486 = vrcp.pop 32.0
      %v487 = vmul.f32 %v485, %v486
      %v488 = vsub.f32 %v478, %v487
      %v489 = vmul.f32 %v488, %v488
      %v490 = vsel %vm482, %v489, 0.0
      %491 = vadd.xlane.f32.xlu0 %v490
      %v492 = vpop.xlane.xlu0 %491
      %v493 = vmul.f32 %v492, %v486
      %v494 = vadd.f32 %v493, 1e-05
      %v495 = vrsqrt.pop %v494
      %v496 = vmul.f32 %v488, %v495
      %v498 = vlaneseq
      %v499 = vshrl.u32 %v498, 7
      %v500 = vsub.s32 0, %v499
      %v501 = vrot.slane %v480, %v500
      %v503 = vmul.f32 %v496, %v501
      %v505 = vlaneseq
      %v506 = vshrl.u32 %v505, 7
      %v507 = vsub.s32 0, %v506
      %v508 = vrot.slane %v481, %v507
      %v510 = vadd.f32 %v503, %v508
      %v511 = vpack.c.bf16 %v510, %v510
      %v512 = vld [vmem:[%s4] sm:$0xf]
      %v513 = vld [vmem:[%s4 + $0x4] sm:$0xf]
      %v514 = vld [vmem:[%s4 + $0x8] sm:$0xf]
      %v515 = vld [vmem:[%s4 + $0xc] sm:$0xf]
      %v516 = vld [vmem:[%s5] sm:$0x1]
      %v518 = vlaneseq
      %v519 = vshrl.u32 %v518, 7
      %v520 = vsub.s32 0, %v519
      %v521 = vrot.slane %v516, %v520
      %v527 = vunpack.c.l.b16 %v512
      %v528 = vunpack.c.l.b16 %v513
      %v529 = vunpack.c.l.b16 %v514
      %v530 = vunpack.c.l.b16 %v515
      %v531 = vpack.c.b16 %v528, %v527
      %v532 = vpack.c.b16 %v530, %v529
      %v536 = vsel %vm482, %v511, 0
      %538 = vmatprep.subr.bf16.mxu0 0
      %539 = vmatpush1.bf16.msra.mxu0 0
      %540 = vmatprep.subr.bf16.mxu0 0
      %541 = vmatpush1.bf16.msra.mxu0 0
      %542 = vmatprep.subr.bf16.mxu0 0
      %543 = vmatpush1.bf16.msra.mxu0 0
      %544 = vmatprep.subr.bf16.mxu0 0
      %545 = vmatpush1.bf16.msra.mxu0 0
      %546 = vmatprep.subr.bf16.mxu0 0
      %547 = vmatpush1.bf16.msra.mxu0 0
      %548 = vmatprep.subr.bf16.mxu0 0
      %549 = vmatpush1.bf16.msra.mxu0 0
      %550 = vmatprep.subr.bf16.mxu0 0
      %551 = vmatpush1.bf16.msra.mxu0 %v532
      %552 = vmatprep.subr.bf16.mxu0 0
      %553 = vmatpush1.bf16.msra.mxu0 %v531
      %554 = vmatprep.subr.bf16.mxu0 0
      %555 = vmatpush2.bf16.msra.mxu0 0
      %556 = vmatprep.subr.bf16.mxu0 0
      %557 = vmatpush2.bf16.msra.mxu0 0
      %558 = vmatprep.subr.bf16.mxu0 0
      %559 = vmatpush2.bf16.msra.mxu0 0
      %560 = vmatprep.subr.bf16.mxu0 0
      %561 = vmatpush2.bf16.msra.mxu0 0
      %562 = vmatprep.subr.bf16.mxu0 0
      %563 = vmatpush2.bf16.msra.mxu0 0
      %564 = vmatprep.subr.bf16.mxu0 0
      %565 = vmatpush2.bf16.msra.mxu0 0
      %566 = vmatprep.subr.bf16.mxu0 0
      %567 = vmatpush2.bf16.msra.mxu0 0
      %568 = vmatprep.subr.bf16.mxu0 0
      %569 = vmatpush2.bf16.msra.mxu0 0
      %570 = vmatprep.mubr.bf16.mxu0 0
      %571 = vmatmul.mubr.bf16.gmra.mxu0 %v536
      %v572 = vpop.f32.mrf.mxu0
      %v573 = vadd.f32 %v521, %v572
      %v574 = vpop.f32.mrf.mxu0
      %v575 = vpop.f32.mrf.mxu0
      %v576 = vpop.f32.mrf.mxu0
      %577 = vdwg.mxu0
      %v578 = vld [vmem:[%s6] sm:$0xf]
      %v579 = vld [vmem:[%s6 + $0x4] sm:$0xf]
      %v580 = vld [vmem:[%s6 + $0x8] sm:$0xf]
      %v581 = vld [vmem:[%s6 + $0xc] sm:$0xf]
      %v582 = vmul.f32 %v573, 0.35355338
      %v583 = vpack.c.bf16 %v582, %v582
      %v584 = vpack.c.bf16 %v573, %v573
      %v586 = vlaneseq
      %v587 = vshrl.u32 %v586, 7
      %v588 = vsub.s32 0, %v587
      %v589 = vrot.slane %v479, %v588
      %592 = vrot.lane.b32.xlu0 %v584, 96
      %v593 = vpop.permute.xlu0 %592
      %vm594 = vcmask 64512
      %v596 = vsel %vm594, %v583, 0
      %v599 = vsel %vm594, %v593, 0
      %601 = vmatprep.subr.bf16.mxu0 0
      %602 = vmatpush1.bf16.xpose.msra.mxu0 0
      %603 = vmatprep.subr.bf16.mxu0 0
      %604 = vmatpush1.bf16.xpose.msra.mxu0 0
      %605 = vmatprep.subr.bf16.mxu0 0
      %606 = vmatpush1.bf16.xpose.msra.mxu0 0
      %607 = vmatprep.subr.bf16.mxu0 0
      %608 = vmatpush1.bf16.xpose.msra.mxu0 0
      %609 = vmatprep.subr.bf16.mxu0 0
      %610 = vmatpush1.bf16.xpose.msra.mxu0 0
      %611 = vmatprep.subr.bf16.mxu0 0
      %612 = vmatpush1.bf16.xpose.msra.mxu0 0
      %613 = vmatprep.subr.bf16.mxu0 0
      %614 = vmatpush1.bf16.xpose.msra.mxu0 0
      %615 = vmatprep.subr.bf16.mxu0 0
      %616 = vmatpush1.bf16.xpose.msra.mxu0 %v599
      %617 = vmatprep.subr.bf16.mxu0 0
      %618 = vmatpush2.bf16.xpose.msra.mxu0 0
      %619 = vmatprep.subr.bf16.mxu0 0
      %620 = vmatpush2.bf16.xpose.msra.mxu0 0
      %621 = vmatprep.subr.bf16.mxu0 0
      %622 = vmatpush2.bf16.xpose.msra.mxu0 0
      %623 = vmatprep.subr.bf16.mxu0 0
      %624 = vmatpush2.bf16.xpose.msra.mxu0 0
      %625 = vmatprep.subr.bf16.mxu0 0
      %626 = vmatpush2.bf16.xpose.msra.mxu0 0
      %627 = vmatprep.subr.bf16.mxu0 0
      %628 = vmatpush2.bf16.xpose.msra.mxu0 0
      %629 = vmatprep.subr.bf16.mxu0 0
      %630 = vmatpush2.bf16.xpose.msra.mxu0 0
      %631 = vmatprep.subr.bf16.mxu0 0
      %632 = vmatpush2.bf16.xpose.msra.mxu0 0
      %633 = vmatprep.mubr.bf16.mxu0 0
      %634 = vmatmul.mubr.bf16.gmra.mxu0 %v596
      %v635 = vpop.f32.mrf.mxu0
      %v636 = vadd.f32 %v589, %v635
      %v637 = vpop.f32.mrf.mxu0
      %v638 = vpop.f32.mrf.mxu0
      %v639 = vpop.f32.mrf.mxu0
      %640 = vdwg.mxu0
      %v641 = vsel %vm594, %v636, -inf
      %642 = vmax.xlane.f32.xlu0 %v641
      %v643 = vpop.xlane.xlu0 %642
      %v644 = vsub.f32 %v636, %v643
      %v645 = vmul.f32 %v644, 1.442695
      %v646 = vpow.pop %v645
      %v647 = vsel %vm594, %v646, 0.0
      %648 = vadd.xlane.f32.xlu0 %v647
      %v649 = vpop.xlane.xlu0 %648
      %v650 = vrcp.pop %v649
      %v651 = vmul.f32 %v646, %v650
      %v652 = vpack.c.bf16 %v651, %v651
      %653 = vrot.lane.b32.xlu0 %v584, 64
      %v654 = vpop.permute.xlu0 %653
      %v656 = vsel %vm594, %v652, 0
      %vm658 = vcmask 1043456
      %v660 = vsel %vm658, %v654, 0
      %662 = vmatprep.subr.bf16.mxu0 0
      %663 = vmatpush1.bf16.msra.mxu0 0
      %664 = vmatprep.subr.bf16.mxu0 0
      %665 = vmatpush1.bf16.msra.mxu0 0
      %666 = vmatprep.subr.bf16.mxu0 0
      %667 = vmatpush1.bf16.msra.mxu0 0
      %668 = vmatprep.subr.bf16.mxu0 0
      %669 = vmatpush1.bf16.msra.mxu0 0
      %670 = vmatprep.subr.bf16.mxu0 0
      %671 = vmatpush1.bf16.msra.mxu0 0
      %672 = vmatprep.subr.bf16.mxu0 0
      %673 = vmatpush1.bf16.msra.mxu0 0
      %674 = vmatprep.subr.bf16.mxu0 0
      %675 = vmatpush1.bf16.msra.mxu0 0
      %676 = vmatprep.subr.bf16.mxu0 0
      %677 = vmatpush1.bf16.msra.mxu0 %v660
      %678 = vmatprep.subr.bf16.mxu0 0
      %679 = vmatpush2.bf16.msra.mxu0 0
      %680 = vmatprep.subr.bf16.mxu0 0
      %681 = vmatpush2.bf16.msra.mxu0 0
      %682 = vmatprep.subr.bf16.mxu0 0
      %683 = vmatpush2.bf16.msra.mxu0 0
      %684 = vmatprep.subr.bf16.mxu0 0
      %685 = vmatpush2.bf16.msra.mxu0 0
      %686 = vmatprep.subr.bf16.mxu0 0
      %687 = vmatpush2.bf16.msra.mxu0 0
      %688 = vmatprep.subr.bf16.mxu0 0
      %689 = vmatpush2.bf16.msra.mxu0 0
      %690 = vmatprep.subr.bf16.mxu0 0
      %691 = vmatpush2.bf16.msra.mxu0 0
      %692 = vmatprep.subr.bf16.mxu0 0
      %693 = vmatpush2.bf16.msra.mxu0 0
      %694 = vmatprep.mubr.bf16.mxu0 0
      %695 = vmatmul.mubr.bf16.gmra.mxu0 %v656
      %v696 = vpop.f32.mrf.mxu0
      %v697 = vadd.f32 0.0, %v696
      %v698 = vpop.f32.mrf.mxu0
      %v699 = vpop.f32.mrf.mxu0
      %v700 = vpop.f32.mrf.mxu0
      %701 = vdwg.mxu0
      %v702 = vpack.c.bf16 %v697, %v697
      %704 = vrot.lane.b32.xlu0 %v583, 120
      %v705 = vpop.permute.xlu0 %704
      %706 = vrot.lane.b32.xlu0 %v584, 88
      %v707 = vpop.permute.xlu0 %706
      %v709 = vsel %vm594, %v705, 0
      %v712 = vsel %vm594, %v707, 0
      %714 = vmatprep.subr.bf16.mxu0 0
      %715 = vmatpush1.bf16.xpose.msra.mxu0 0
      %716 = vmatprep.subr.bf16.mxu0 0
      %717 = vmatpush1.bf16.xpose.msra.mxu0 0
      %718 = vmatprep.subr.bf16.mxu0 0
      %719 = vmatpush1.bf16.xpose.msra.mxu0 0
      %720 = vmatprep.subr.bf16.mxu0 0
      %721 = vmatpush1.bf16.xpose.msra.mxu0 0
      %722 = vmatprep.subr.bf16.mxu0 0
      %723 = vmatpush1.bf16.xpose.msra.mxu0 0
      %724 = vmatprep.subr.bf16.mxu0 0
      %725 = vmatpush1.bf16.xpose.msra.mxu0 0
      %726 = vmatprep.subr.bf16.mxu0 0
      %727 = vmatpush1.bf16.xpose.msra.mxu0 0
      %728 = vmatprep.subr.bf16.mxu0 0
      %729 = vmatpush1.bf16.xpose.msra.mxu0 %v712
      %730 = vmatprep.subr.bf16.mxu0 0
      %731 = vmatpush2.bf16.xpose.msra.mxu0 0
      %732 = vmatprep.subr.bf16.mxu0 0
      %733 = vmatpush2.bf16.xpose.msra.mxu0 0
      %734 = vmatprep.subr.bf16.mxu0 0
      %735 = vmatpush2.bf16.xpose.msra.mxu0 0
      %736 = vmatprep.subr.bf16.mxu0 0
      %737 = vmatpush2.bf16.xpose.msra.mxu0 0
      %738 = vmatprep.subr.bf16.mxu0 0
      %739 = vmatpush2.bf16.xpose.msra.mxu0 0
      %740 = vmatprep.subr.bf16.mxu0 0
      %741 = vmatpush2.bf16.xpose.msra.mxu0 0
      %742 = vmatprep.subr.bf16.mxu0 0
      %743 = vmatpush2.bf16.xpose.msra.mxu0 0
      %744 = vmatprep.subr.bf16.mxu0 0
      %745 = vmatpush2.bf16.xpose.msra.mxu0 0
      %746 = vmatprep.mubr.bf16.mxu0 0
      %747 = vmatmul.mubr.bf16.gmra.mxu0 %v709
      %v748 = vpop.f32.mrf.mxu0
      %v749 = vadd.f32 %v589, %v748
      %v750 = vpop.f32.mrf.mxu0
      %v751 = vpop.f32.mrf.mxu0
      %v752 = vpop.f32.mrf.mxu0
      %753 = vdwg.mxu0
      %v754 = vsel %vm594, %v749, -inf
      %755 = vmax.xlane.f32.xlu0 %v754
      %v756 = vpop.xlane.xlu0 %755
      %v757 = vsub.f32 %v749, %v756
      %v758 = vmul.f32 %v757, 1.442695
      %v759 = vpow.pop %v758
      %v760 = vsel %vm594, %v759, 0.0
      %761 = vadd.xlane.f32.xlu0 %v760
      %v762 = vpop.xlane.xlu0 %761
      %v763 = vrcp.pop %v762
      %v764 = vmul.f32 %v759, %v763
      %v765 = vpack.c.bf16 %v764, %v764
      %766 = vrot.lane.b32.xlu0 %v584, 56
      %v767 = vpop.permute.xlu0 %766
      %v769 = vsel %vm594, %v765, 0
      %v772 = vsel %vm658, %v767, 0
      %774 = vmatprep.subr.bf16.mxu0 0
      %775 = vmatpush1.bf16.msra.mxu0 0
      %776 = vmatprep.subr.bf16.mxu0 0
      %777 = vmatpush1.bf16.msra.mxu0 0
      %778 = vmatprep.subr.bf16.mxu0 0
      %779 = vmatpush1.bf16.msra.mxu0 0
      %780 = vmatprep.subr.bf16.mxu0 0
      %781 = vmatpush1.bf16.msra.mxu0 0
      %782 = vmatprep.subr.bf16.mxu0 0
      %783 = vmatpush1.bf16.msra.mxu0 0
      %784 = vmatprep.subr.bf16.mxu0 0
      %785 = vmatpush1.bf16.msra.mxu0 0
      %786 = vmatprep.subr.bf16.mxu0 0
      %787 = vmatpush1.bf16.msra.mxu0 0
      %788 = vmatprep.subr.bf16.mxu0 0
      %789 = vmatpush1.bf16.msra.mxu0 %v772
      %790 = vmatprep.subr.bf16.mxu0 0
      %791 = vmatpush2.bf16.msra.mxu0 0
      %792 = vmatprep.subr.bf16.mxu0 0
      %793 = vmatpush2.bf16.msra.mxu0 0
      %794 = vmatprep.subr.bf16.mxu0 0
      %795 = vmatpush2.bf16.msra.mxu0 0
      %796 = vmatprep.subr.bf16.mxu0 0
      %797 = vmatpush2.bf16.msra.mxu0 0
      %798 = vmatprep.subr.bf16.mxu0 0
      %799 = vmatpush2.bf16.msra.mxu0 0
      %800 = vmatprep.subr.bf16.mxu0 0
      %801 = vmatpush2.bf16.msra.mxu0 0
      %802 = vmatprep.subr.bf16.mxu0 0
      %803 = vmatpush2.bf16.msra.mxu0 0
      %804 = vmatprep.subr.bf16.mxu0 0
      %805 = vmatpush2.bf16.msra.mxu0 0
      %806 = vmatprep.mubr.bf16.mxu0 0
      %807 = vmatmul.mubr.bf16.gmra.mxu0 %v769
      %v808 = vpop.f32.mrf.mxu0
      %v809 = vadd.f32 0.0, %v808
      %v810 = vpop.f32.mrf.mxu0
      %v811 = vpop.f32.mrf.mxu0
      %v812 = vpop.f32.mrf.mxu0
      %813 = vdwg.mxu0
      %v814 = vpack.c.bf16 %v809, %v809
      %v816 = vsel %vm594, %v814, 0
      %v819 = vsel %vm658, %v579, 0
      %821 = vmatprep.subr.bf16.mxu0 0
      %822 = vmatpush1.bf16.msra.mxu0 0
      %823 = vmatprep.subr.bf16.mxu0 0
      %824 = vmatpush1.bf16.msra.mxu0 0
      %825 = vmatprep.subr.bf16.mxu0 0
      %826 = vmatpush1.bf16.msra.mxu0 0
      %827 = vmatprep.subr.bf16.mxu0 0
      %828 = vmatpush1.bf16.msra.mxu0 0
      %829 = vmatprep.subr.bf16.mxu0 0
      %830 = vmatpush1.bf16.msra.mxu0 0
      %831 = vmatprep.subr.bf16.mxu0 0
      %832 = vmatpush1.bf16.msra.mxu0 0
      %833 = vmatprep.subr.bf16.mxu0 0
      %834 = vmatpush1.bf16.msra.mxu0 0
      %835 = vmatprep.subr.bf16.mxu0 0
      %836 = vmatpush1.bf16.msra.mxu0 %v819
      %837 = vmatprep.subr.bf16.mxu0 0
      %838 = vmatpush2.bf16.msra.mxu0 0
      %839 = vmatprep.subr.bf16.mxu0 0
      %840 = vmatpush2.bf16.msra.mxu0 0
      %841 = vmatprep.subr.bf16.mxu0 0
      %842 = vmatpush2.bf16.msra.mxu0 0
      %843 = vmatprep.subr.bf16.mxu0 0
      %844 = vmatpush2.bf16.msra.mxu0 0
      %845 = vmatprep.subr.bf16.mxu0 0
      %846 = vmatpush2.bf16.msra.mxu0 0
      %847 = vmatprep.subr.bf16.mxu0 0
      %848 = vmatpush2.bf16.msra.mxu0 0
      %849 = vmatprep.subr.bf16.mxu0 0
      %850 = vmatpush2.bf16.msra.mxu0 0
      %851 = vmatprep.subr.bf16.mxu0 0
      %852 = vmatpush2.bf16.msra.mxu0 0
      %853 = vmatprep.mubr.bf16.mxu0 0
      %854 = vmatmul.mubr.bf16.gmra.mxu0 %v816
      %v855 = vpop.f32.mrf.mxu0
      %v856 = vadd.f32 0.0, %v855
      %v857 = vpop.f32.mrf.mxu0
      %v858 = vpop.f32.mrf.mxu0
      %v859 = vpop.f32.mrf.mxu0
      %860 = vdwg.mxu0
      %v862 = vsel %vm594, %v702, 0
      %v865 = vsel %vm658, %v578, 0
      %867 = vmatprep.subr.bf16.mxu0 0
      %868 = vmatpush1.bf16.msra.mxu0 0
      %869 = vmatprep.subr.bf16.mxu0 0
      %870 = vmatpush1.bf16.msra.mxu0 0
      %871 = vmatprep.subr.bf16.mxu0 0
      %872 = vmatpush1.bf16.msra.mxu0 0
      %873 = vmatprep.subr.bf16.mxu0 0
      %874 = vmatpush1.bf16.msra.mxu0 0
      %875 = vmatprep.subr.bf16.mxu0 0
      %876 = vmatpush1.bf16.msra.mxu0 0
      %877 = vmatprep.subr.bf16.mxu0 0
      %878 = vmatpush1.bf16.msra.mxu0 0
      %879 = vmatprep.subr.bf16.mxu0 0
      %880 = vmatpush1.bf16.msra.mxu0 0
      %881 = vmatprep.subr.bf16.mxu0 0
      %882 = vmatpush1.bf16.msra.mxu0 %v865
      %883 = vmatprep.subr.bf16.mxu0 0
      %884 = vmatpush2.bf16.msra.mxu0 0
      %885 = vmatprep.subr.bf16.mxu0 0
      %886 = vmatpush2.bf16.msra.mxu0 0
      %887 = vmatprep.subr.bf16.mxu0 0
      %888 = vmatpush2.bf16.msra.mxu0 0
      %889 = vmatprep.subr.bf16.mxu0 0
      %890 = vmatpush2.bf16.msra.mxu0 0
      %891 = vmatprep.subr.bf16.mxu0 0
      %892 = vmatpush2.bf16.msra.mxu0 0
      %893 = vmatprep.subr.bf16.mxu0 0
      %894 = vmatpush2.bf16.msra.mxu0 0
      %895 = vmatprep.subr.bf16.mxu0 0
      %896 = vmatpush2.bf16.msra.mxu0 0
      %897 = vmatprep.subr.bf16.mxu0 0
      %898 = vmatpush2.bf16.msra.mxu0 0
      %899 = vmatprep.mubr.bf16.mxu0 0
      %900 = vmatmul.mubr.bf16.gmra.mxu0 %v862
      %v901 = vpop.f32.mrf.mxu0
      %v902 = vadd.f32 %v856, %v901
      %v903 = vpop.f32.mrf.mxu0
      %v904 = vpop.f32.mrf.mxu0
      %v905 = vpop.f32.mrf.mxu0
      %906 = vdwg.mxu0
      %907 = vrot.lane.b32.xlu0 %v583, 112
      %v908 = vpop.permute.xlu0 %907
      %909 = vrot.lane.b32.xlu0 %v584, 80
      %v910 = vpop.permute.xlu0 %909
      %v912 = vsel %vm594, %v908, 0
      %v915 = vsel %vm594, %v910, 0
      %917 = vmatprep.subr.bf16.mxu0 0
      %918 = vmatpush1.bf16.xpose.msra.mxu0 0
      %919 = vmatprep.subr.bf16.mxu0 0
      %920 = vmatpush1.bf16.xpose.msra.mxu0 0
      %921 = vmatprep.subr.bf16.mxu0 0
      %922 = vmatpush1.bf16.xpose.msra.mxu0 0
      %923 = vmatprep.subr.bf16.mxu0 0
      %924 = vmatpush1.bf16.xpose.msra.mxu0 0
      %925 = vmatprep.subr.bf16.mxu0 0
      %926 = vmatpush1.bf16.xpose.msra.mxu0 0
      %927 = vmatprep.subr.bf16.mxu0 0
      %928 = vmatpush1.bf16.xpose.msra.mxu0 0
      %929 = vmatprep.subr.bf16.mxu0 0
      %930 = vmatpush1.bf16.xpose.msra.mxu0 0
      %931 = vmatprep.subr.bf16.mxu0 0
      %932 = vmatpush1.bf16.xpose.msra.mxu0 %v915
      %933 = vmatprep.subr.bf16.mxu0 0
      %934 = vmatpush2.bf16.xpose.msra.mxu0 0
      %935 = vmatprep.subr.bf16.mxu0 0
      %936 = vmatpush2.bf16.xpose.msra.mxu0 0
      %937 = vmatprep.subr.bf16.mxu0 0
      %938 = vmatpush2.bf16.xpose.msra.mxu0 0
      %939 = vmatprep.subr.bf16.mxu0 0
      %940 = vmatpush2.bf16.xpose.msra.mxu0 0
      %941 = vmatprep.subr.bf16.mxu0 0
      %942 = vmatpush2.bf16.xpose.msra.mxu0 0
      %943 = vmatprep.subr.bf16.mxu0 0
      %944 = vmatpush2.bf16.xpose.msra.mxu0 0
      %945 = vmatprep.subr.bf16.mxu0 0
      %946 = vmatpush2.bf16.xpose.msra.mxu0 0
      %947 = vmatprep.subr.bf16.mxu0 0
      %948 = vmatpush2.bf16.xpose.msra.mxu0 0
      %949 = vmatprep.mubr.bf16.mxu0 0
      %950 = vmatmul.mubr.bf16.gmra.mxu0 %v912
      %v951 = vpop.f32.mrf.mxu0
      %v952 = vadd.f32 %v589, %v951
      %v953 = vpop.f32.mrf.mxu0
      %v954 = vpop.f32.mrf.mxu0
      %v955 = vpop.f32.mrf.mxu0
      %956 = vdwg.mxu0
      %v957 = vsel %vm594, %v952, -inf
      %958 = vmax.xlane.f32.xlu0 %v957
      %v959 = vpop.xlane.xlu0 %958
      %v960 = vsub.f32 %v952, %v959
      %v961 = vmul.f32 %v960, 1.442695
      %v962 = vpow.pop %v961
      %v963 = vsel %vm594, %v962, 0.0
      %964 = vadd.xlane.f32.xlu0 %v963
      %v965 = vpop.xlane.xlu0 %964
      %v966 = vrcp.pop %v965
      %v967 = vmul.f32 %v962, %v966
      %v968 = vpack.c.bf16 %v967, %v967
      %969 = vrot.lane.b32.xlu0 %v584, 48
      %v970 = vpop.permute.xlu0 %969
      %v972 = vsel %vm594, %v968, 0
      %v975 = vsel %vm658, %v970, 0
      %977 = vmatprep.subr.bf16.mxu0 0
      %978 = vmatpush1.bf16.msra.mxu0 0
      %979 = vmatprep.subr.bf16.mxu0 0
      %980 = vmatpush1.bf16.msra.mxu0 0
      %981 = vmatprep.subr.bf16.mxu0 0
      %982 = vmatpush1.bf16.msra.mxu0 0
      %983 = vmatprep.subr.bf16.mxu0 0
      %984 = vmatpush1.bf16.msra.mxu0 0
      %985 = vmatprep.subr.bf16.mxu0 0
      %986 = vmatpush1.bf16.msra.mxu0 0
      %987 = vmatprep.subr.bf16.mxu0 0
      %988 = vmatpush1.bf16.msra.mxu0 0
      %989 = vmatprep.subr.bf16.mxu0 0
      %990 = vmatpush1.bf16.msra.mxu0 0
      %991 = vmatprep.subr.bf16.mxu0 0
      %992 = vmatpush1.bf16.msra.mxu0 %v975
      %993 = vmatprep.subr.bf16.mxu0 0
      %994 = vmatpush2.bf16.msra.mxu0 0
      %995 = vmatprep.subr.bf16.mxu0 0
      %996 = vmatpush2.bf16.msra.mxu0 0
      %997 = vmatprep.subr.bf16.mxu0 0
      %998 = vmatpush2.bf16.msra.mxu0 0
      %999 = vmatprep.subr.bf16.mxu0 0
      %1000 = vmatpush2.bf16.msra.mxu0 0
      %1001 = vmatprep.subr.bf16.mxu0 0
      %1002 = vmatpush2.bf16.msra.mxu0 0
      %1003 = vmatprep.subr.bf16.mxu0 0
      %1004 = vmatpush2.bf16.msra.mxu0 0
      %1005 = vmatprep.subr.bf16.mxu0 0
      %1006 = vmatpush2.bf16.msra.mxu0 0
      %1007 = vmatprep.subr.bf16.mxu0 0
      %1008 = vmatpush2.bf16.msra.mxu0 0
      %1009 = vmatprep.mubr.bf16.mxu0 0
      %1010 = vmatmul.mubr.bf16.gmra.mxu0 %v972
      %v1011 = vpop.f32.mrf.mxu0
      %v1012 = vadd.f32 0.0, %v1011
      %v1013 = vpop.f32.mrf.mxu0
      %v1014 = vpop.f32.mrf.mxu0
      %v1015 = vpop.f32.mrf.mxu0
      %1016 = vdwg.mxu0
      %v1017 = vpack.c.bf16 %v1012, %v1012
      %v1019 = vsel %vm594, %v1017, 0
      %v1022 = vsel %vm658, %v580, 0
      %1024 = vmatprep.subr.bf16.mxu0 0
      %1025 = vmatpush1.bf16.msra.mxu0 0
      %1026 = vmatprep.subr.bf16.mxu0 0
      %1027 = vmatpush1.bf16.msra.mxu0 0
      %1028 = vmatprep.subr.bf16.mxu0 0
      %1029 = vmatpush1.bf16.msra.mxu0 0
      %1030 = vmatprep.subr.bf16.mxu0 0
      %1031 = vmatpush1.bf16.msra.mxu0 0
      %1032 = vmatprep.subr.bf16.mxu0 0
      %1033 = vmatpush1.bf16.msra.mxu0 0
      %1034 = vmatprep.subr.bf16.mxu0 0
      %1035 = vmatpush1.bf16.msra.mxu0 0
      %1036 = vmatprep.subr.bf16.mxu0 0
      %1037 = vmatpush1.bf16.msra.mxu0 0
      %1038 = vmatprep.subr.bf16.mxu0 0
      %1039 = vmatpush1.bf16.msra.mxu0 %v1022
      %1040 = vmatprep.subr.bf16.mxu0 0
      %1041 = vmatpush2.bf16.msra.mxu0 0
      %1042 = vmatprep.subr.bf16.mxu0 0
      %1043 = vmatpush2.bf16.msra.mxu0 0
      %1044 = vmatprep.subr.bf16.mxu0 0
      %1045 = vmatpush2.bf16.msra.mxu0 0
      %1046 = vmatprep.subr.bf16.mxu0 0
      %1047 = vmatpush2.bf16.msra.mxu0 0
      %1048 = vmatprep.subr.bf16.mxu0 0
      %1049 = vmatpush2.bf16.msra.mxu0 0
      %1050 = vmatprep.subr.bf16.mxu0 0
      %1051 = vmatpush2.bf16.msra.mxu0 0
      %1052 = vmatprep.subr.bf16.mxu0 0
      %1053 = vmatpush2.bf16.msra.mxu0 0
      %1054 = vmatprep.subr.bf16.mxu0 0
      %1055 = vmatpush2.bf16.msra.mxu0 0
      %1056 = vmatprep.mubr.bf16.mxu0 0
      %1057 = vmatmul.mubr.bf16.gmra.mxu0 %v1019
      %v1058 = vpop.f32.mrf.mxu0
      %v1059 = vadd.f32 0.0, %v1058
      %v1060 = vpop.f32.mrf.mxu0
      %v1061 = vpop.f32.mrf.mxu0
      %v1062 = vpop.f32.mrf.mxu0
      %1063 = vdwg.mxu0
      %v1064 = vadd.f32 %v902, %v1059
      %1065 = vrot.lane.b32.xlu0 %v583, 104
      %v1066 = vpop.permute.xlu0 %1065
      %1067 = vrot.lane.b32.xlu0 %v584, 72
      %v1068 = vpop.permute.xlu0 %1067
      %v1070 = vsel %vm594, %v1066, 0
      %v1073 = vsel %vm594, %v1068, 0
      %1075 = vmatprep.subr.bf16.mxu0 0
      %1076 = vmatpush1.bf16.xpose.msra.mxu0 0
      %1077 = vmatprep.subr.bf16.mxu0 0
      %1078 = vmatpush1.bf16.xpose.msra.mxu0 0
      %1079 = vmatprep.subr.bf16.mxu0 0
      %1080 = vmatpush1.bf16.xpose.msra.mxu0 0
      %1081 = vmatprep.subr.bf16.mxu0 0
      %1082 = vmatpush1.bf16.xpose.msra.mxu0 0
      %1083 = vmatprep.subr.bf16.mxu0 0
      %1084 = vmatpush1.bf16.xpose.msra.mxu0 0
      %1085 = vmatprep.subr.bf16.mxu0 0
      %1086 = vmatpush1.bf16.xpose.msra.mxu0 0
      %1087 = vmatprep.subr.bf16.mxu0 0
      %1088 = vmatpush1.bf16.xpose.msra.mxu0 0
      %1089 = vmatprep.subr.bf16.mxu0 0
      %1090 = vmatpush1.bf16.xpose.msra.mxu0 %v1073
      %1091 = vmatprep.subr.bf16.mxu0 0
      %1092 = vmatpush2.bf16.xpose.msra.mxu0 0
      %1093 = vmatprep.subr.bf16.mxu0 0
      %1094 = vmatpush2.bf16.xpose.msra.mxu0 0
      %1095 = vmatprep.subr.bf16.mxu0 0
      %1096 = vmatpush2.bf16.xpose.msra.mxu0 0
      %1097 = vmatprep.subr.bf16.mxu0 0
      %1098 = vmatpush2.bf16.xpose.msra.mxu0 0
      %1099 = vmatprep.subr.bf16.mxu0 0
      %1100 = vmatpush2.bf16.xpose.msra.mxu0 0
      %1101 = vmatprep.subr.bf16.mxu0 0
      %1102 = vmatpush2.bf16.xpose.msra.mxu0 0
      %1103 = vmatprep.subr.bf16.mxu0 0
      %1104 = vmatpush2.bf16.xpose.msra.mxu0 0
      %1105 = vmatprep.subr.bf16.mxu0 0
      %1106 = vmatpush2.bf16.xpose.msra.mxu0 0
      %1107 = vmatprep.mubr.bf16.mxu0 0
      %1108 = vmatmul.mubr.bf16.gmra.mxu0 %v1070
      %v1109 = vpop.f32.mrf.mxu0
      %v1110 = vadd.f32 %v589, %v1109
      %v1111 = vpop.f32.mrf.mxu0
      %v1112 = vpop.f32.mrf.mxu0
      %v1113 = vpop.f32.mrf.mxu0
      %1114 = vdwg.mxu0
      %v1115 = vsel %vm594, %v1110, -inf
      %1116 = vmax.xlane.f32.xlu0 %v1115
      %v1117 = vpop.xlane.xlu0 %1116
      %v1118 = vsub.f32 %v1110, %v1117
      %v1119 = vmul.f32 %v1118, 1.442695
      %v1120 = vpow.pop %v1119
      %v1121 = vsel %vm594, %v1120, 0.0
      %1122 = vadd.xlane.f32.xlu0 %v1121
      %v1123 = vpop.xlane.xlu0 %1122
      %v1124 = vrcp.pop %v1123
      %v1125 = vmul.f32 %v1120, %v1124
      %v1126 = vpack.c.bf16 %v1125, %v1125
      %1127 = vrot.lane.b32.xlu0 %v584, 40
      %v1128 = vpop.permute.xlu0 %1127
      %v1130 = vsel %vm594, %v1126, 0
      %v1133 = vsel %vm658, %v1128, 0
      %1135 = vmatprep.subr.bf16.mxu0 0
      %1136 = vmatpush1.bf16.msra.mxu0 0
      %1137 = vmatprep.subr.bf16.mxu0 0
      %1138 = vmatpush1.bf16.msra.mxu0 0
      %1139 = vmatprep.subr.bf16.mxu0 0
      %1140 = vmatpush1.bf16.msra.mxu0 0
      %1141 = vmatprep.subr.bf16.mxu0 0
      %1142 = vmatpush1.bf16.msra.mxu0 0
      %1143 = vmatprep.subr.bf16.mxu0 0
      %1144 = vmatpush1.bf16.msra.mxu0 0
      %1145 = vmatprep.subr.bf16.mxu0 0
      %1146 = vmatpush1.bf16.msra.mxu0 0
      %1147 = vmatprep.subr.bf16.mxu0 0
      %1148 = vmatpush1.bf16.msra.mxu0 0
      %1149 = vmatprep.subr.bf16.mxu0 0
      %1150 = vmatpush1.bf16.msra.mxu0 %v1133
      %1151 = vmatprep.subr.bf16.mxu0 0
      %1152 = vmatpush2.bf16.msra.mxu0 0
      %1153 = vmatprep.subr.bf16.mxu0 0
      %1154 = vmatpush2.bf16.msra.mxu0 0
      %1155 = vmatprep.subr.bf16.mxu0 0
      %1156 = vmatpush2.bf16.msra.mxu0 0
      %1157 = vmatprep.subr.bf16.mxu0 0
      %1158 = vmatpush2.bf16.msra.mxu0 0
      %1159 = vmatprep.subr.bf16.mxu0 0
      %1160 = vmatpush2.bf16.msra.mxu0 0
      %1161 = vmatprep.subr.bf16.mxu0 0
      %1162 = vmatpush2.bf16.msra.mxu0 0
      %1163 = vmatprep.subr.bf16.mxu0 0
      %1164 = vmatpush2.bf16.msra.mxu0 0
      %1165 = vmatprep.subr.bf16.mxu0 0
      %1166 = vmatpush2.bf16.msra.mxu0 0
      %1167 = vmatprep.mubr.bf16.mxu0 0
      %1168 = vmatmul.mubr.bf16.gmra.mxu0 %v1130
      %v1169 = vpop.f32.mrf.mxu0
      %v1170 = vadd.f32 0.0, %v1169
      %v1171 = vpop.f32.mrf.mxu0
      %v1172 = vpop.f32.mrf.mxu0
      %v1173 = vpop.f32.mrf.mxu0
      %1174 = vdwg.mxu0
      %v1175 = vpack.c.bf16 %v1170, %v1170
      %v1177 = vsel %vm594, %v1175, 0
      %v1180 = vsel %vm658, %v581, 0
      %1182 = vmatprep.subr.bf16.mxu0 0
      %1183 = vmatpush1.bf16.msra.mxu0 0
      %1184 = vmatprep.subr.bf16.mxu0 0
      %1185 = vmatpush1.bf16.msra.mxu0 0
      %1186 = vmatprep.subr.bf16.mxu0 0
      %1187 = vmatpush1.bf16.msra.mxu0 0
      %1188 = vmatprep.subr.bf16.mxu0 0
      %1189 = vmatpush1.bf16.msra.mxu0 0
      %1190 = vmatprep.subr.bf16.mxu0 0
      %1191 = vmatpush1.bf16.msra.mxu0 0
      %1192 = vmatprep.subr.bf16.mxu0 0
      %1193 = vmatpush1.bf16.msra.mxu0 0
      %1194 = vmatprep.subr.bf16.mxu0 0
      %1195 = vmatpush1.bf16.msra.mxu0 0
      %1196 = vmatprep.subr.bf16.mxu0 0
      %1197 = vmatpush1.bf16.msra.mxu0 %v1180
      %1198 = vmatprep.subr.bf16.mxu0 0
      %1199 = vmatpush2.bf16.msra.mxu0 0
      %1200 = vmatprep.subr.bf16.mxu0 0
      %1201 = vmatpush2.bf16.msra.mxu0 0
      %1202 = vmatprep.subr.bf16.mxu0 0
      %1203 = vmatpush2.bf16.msra.mxu0 0
      %1204 = vmatprep.subr.bf16.mxu0 0
      %1205 = vmatpush2.bf16.msra.mxu0 0
      %1206 = vmatprep.subr.bf16.mxu0 0
      %1207 = vmatpush2.bf16.msra.mxu0 0
      %1208 = vmatprep.subr.bf16.mxu0 0
      %1209 = vmatpush2.bf16.msra.mxu0 0
      %1210 = vmatprep.subr.bf16.mxu0 0
      %1211 = vmatpush2.bf16.msra.mxu0 0
      %1212 = vmatprep.subr.bf16.mxu0 0
      %1213 = vmatpush2.bf16.msra.mxu0 0
      %1214 = vmatprep.mubr.bf16.mxu0 0
      %1215 = vmatmul.mubr.bf16.gmra.mxu0 %v1177
      %v1216 = vpop.f32.mrf.mxu0
      %v1217 = vadd.f32 0.0, %v1216
      %v1218 = vpop.f32.mrf.mxu0
      %v1219 = vpop.f32.mrf.mxu0
      %v1220 = vpop.f32.mrf.mxu0
      %1221 = vdwg.mxu0
      %v1222 = vadd.f32 %v1064, %v1217
      %v1223 = vld [vmem:[%s7] sm:$0x1]
      %v1225 = vlaneseq
      %v1226 = vshrl.u32 %v1225, 7
      %v1227 = vsub.s32 0, %v1226
      %v1228 = vrot.slane %v1223, %v1227
      %v1230 = vadd.f32 %v1222, %v1228
      %v1231 = vadd.f32 %v478, %v1230
      %v1232 = vadd.f32 %v1231, %v510
      %v1233 = vld [vmem:[%s8] sm:$0x1]
      %v1234 = vld [vmem:[%s9] sm:$0x1]
      %v1235 = vsel %vm482, %v1232, 0.0
      %1236 = vadd.xlane.f32.xlu0 %v1235
      %v1237 = vpop.xlane.xlu0 %1236
      %v1238 = vmul.f32 %v1237, %v486
      %v1239 = vsub.f32 %v1232, %v1238
      %v1240 = vmul.f32 %v1239, %v1239
      %v1241 = vsel %vm482, %v1240, 0.0
      %1242 = vadd.xlane.f32.xlu0 %v1241
      %v1243 = vpop.xlane.xlu0 %1242
      %v1244 = vmul.f32 %v1243, %v486
      %v1245 = vadd.f32 %v1244, 1e-05
      %v1246 = vrsqrt.pop %v1245
      %v1247 = vmul.f32 %v1239, %v1246
      %v1249 = vlaneseq
      %v1250 = vshrl.u32 %v1249, 7
      %v1251 = vsub.s32 0, %v1250
      %v1252 = vrot.slane %v1233, %v1251
      %v1254 = vmul.f32 %v1247, %v1252
      %v1256 = vlaneseq
      %v1257 = vshrl.u32 %v1256, 7
      %v1258 = vsub.s32 0, %v1257
      %v1259 = vrot.slane %v1234, %v1258
      %v1261 = vadd.f32 %v1254, %v1259
      %v1262 = vpack.c.bf16 %v1261, %v1261
      %v1263 = vld [vmem:[%s10] sm:$0xf]
      %v1264 = vld [vmem:[%s10 + $0x4] sm:$0xf]
      %v1265 = vld [vmem:[%s10 + $0x8] sm:$0xf]
      %v1266 = vld [vmem:[%s10 + $0xc] sm:$0xf]
      %v1267 = vld [vmem:[%s11] sm:$0x1]
      %v1269 = vlaneseq
      %v1270 = vshrl.u32 %v1269, 7
      %v1271 = vsub.s32 0, %v1270
      %v1272 = vrot.slane %v1267, %v1271
      %v1278 = vunpack.c.l.b16 %v1263
      %v1279 = vunpack.c.l.b16 %v1264
      %v1280 = vunpack.c.l.b16 %v1265
      %v1281 = vunpack.c.l.b16 %v1266
      %v1282 = vpack.c.b16 %v1279, %v1278
      %v1283 = vpack.c.b16 %v1281, %v1280
      %v1287 = vsel %vm482, %v1262, 0
      %1289 = vmatprep.subr.bf16.mxu0 0
      %1290 = vmatpush1.bf16.msra.mxu0 0
      %1291 = vmatprep.subr.bf16.mxu0 0
      %1292 = vmatpush1.bf16.msra.mxu0 0
      %1293 = vmatprep.subr.bf16.mxu0 0
      %1294 = vmatpush1.bf16.msra.mxu0 0
      %1295 = vmatprep.subr.bf16.mxu0 0
      %1296 = vmatpush1.bf16.msra.mxu0 0
      %1297 = vmatprep.subr.bf16.mxu0 0
      %1298 = vmatpush1.bf16.msra.mxu0 0
      %1299 = vmatprep.subr.bf16.mxu0 0
      %1300 = vmatpush1.bf16.msra.mxu0 0
      %1301 = vmatprep.subr.bf16.mxu0 0
      %1302 = vmatpush1.bf16.msra.mxu0 %v1283
      %1303 = vmatprep.subr.bf16.mxu0 0
      %1304 = vmatpush1.bf16.msra.mxu0 %v1282
      %1305 = vmatprep.subr.bf16.mxu0 0
      %1306 = vmatpush2.bf16.msra.mxu0 0
      %1307 = vmatprep.subr.bf16.mxu0 0
      %1308 = vmatpush2.bf16.msra.mxu0 0
      %1309 = vmatprep.subr.bf16.mxu0 0
      %1310 = vmatpush2.bf16.msra.mxu0 0
      %1311 = vmatprep.subr.bf16.mxu0 0
      %1312 = vmatpush2.bf16.msra.mxu0 0
      %1313 = vmatprep.subr.bf16.mxu0 0
      %1314 = vmatpush2.bf16.msra.mxu0 0
      %1315 = vmatprep.subr.bf16.mxu0 0
      %1316 = vmatpush2.bf16.msra.mxu0 0
      %1317 = vmatprep.subr.bf16.mxu0 0
      %1318 = vmatpush2.bf16.msra.mxu0 0
      %1319 = vmatprep.subr.bf16.mxu0 0
      %1320 = vmatpush2.bf16.msra.mxu0 0
      %1321 = vmatprep.mubr.bf16.mxu0 0
      %1322 = vmatmul.mubr.bf16.gmra.mxu0 %v1287
      %v1323 = vpop.f32.mrf.mxu0
      %v1324 = vadd.f32 %v1272, %v1323
      %v1325 = vpop.f32.mrf.mxu0
      %v1326 = vpop.f32.mrf.mxu0
      %v1327 = vpop.f32.mrf.mxu0
      %1328 = vdwg.mxu0
      %v1329 = vmul.f32 %v1324, 0.5
      %v1330 = vmul.f32 %v1324, 0.044715
      %v1331 = vmul.f32 %v1330, %v1324
      %v1332 = vmul.f32 %v1331, %v1324
      %v1333 = vadd.f32 %v1324, %v1332
      %v1334 = vmul.f32 %v1333, 0.7978846
      %v1335 = vtanh.pop %v1334
      %v1336 = vadd.f32 %v1335, 1.0
      %v1337 = vmul.f32 %v1329, %v1336
      %v1338 = vpack.c.bf16 %v1337, %v1337
      %v1339 = vld [vmem:[%s12] sm:$0xf]
      %v1340 = vld [vmem:[%s12 + $0x4] sm:$0xf]
      %v1341 = vld [vmem:[%s12 + $0x8] sm:$0xf]
      %v1342 = vld [vmem:[%s12 + $0xc] sm:$0xf]
      %v1343 = vld [vmem:[%s12 + $0x10] sm:$0xf]
      %v1344 = vld [vmem:[%s12 + $0x14] sm:$0xf]
      %v1345 = vld [vmem:[%s12 + $0x18] sm:$0xf]
      %v1346 = vld [vmem:[%s12 + $0x1c] sm:$0xf]
      %v1347 = vld [vmem:[%s12 + $0x20] sm:$0xf]
      %v1348 = vld [vmem:[%s12 + $0x24] sm:$0xf]
      %v1349 = vld [vmem:[%s12 + $0x28] sm:$0xf]
      %v1350 = vld [vmem:[%s12 + $0x2c] sm:$0xf]
      %v1351 = vld [vmem:[%s12 + $0x30] sm:$0xf]
      %v1352 = vld [vmem:[%s12 + $0x34] sm:$0xf]
      %v1353 = vld [vmem:[%s12 + $0x38] sm:$0xf]
      %v1354 = vld [vmem:[%s12 + $0x3c] sm:$0xf]
      %v1355 = vld [vmem:[%s13] sm:$0x1]
      %v1357 = vlaneseq
      %v1358 = vshrl.u32 %v1357, 7
      %v1359 = vsub.s32 0, %v1358
      %v1360 = vrot.slane %v1355, %v1359
      %v1378 = vunpack.c.l.b16 %v1339
      %v1379 = vunpack.c.l.b16 %v1340
      %v1380 = vunpack.c.l.b16 %v1341
      %v1381 = vunpack.c.l.b16 %v1342
      %v1382 = vunpack.c.l.b16 %v1343
      %v1383 = vunpack.c.l.b16 %v1344
      %v1384 = vunpack.c.l.b16 %v1345
      %v1385 = vunpack.c.l.b16 %v1346
      %v1386 = vunpack.c.l.b16 %v1347
      %v1387 = vunpack.c.l.b16 %v1348
      %v1388 = vunpack.c.l.b16 %v1349
      %v1389 = vunpack.c.l.b16 %v1350
      %v1390 = vunpack.c.l.b16 %v1351
      %v1391 = vunpack.c.l.b16 %v1352
      %v1392 = vunpack.c.l.b16 %v1353
      %v1393 = vunpack.c.l.b16 %v1354
      %v1394 = vpack.c.b16 %v1379, %v1378
      %v1395 = vpack.c.b16 %v1381, %v1380
      %v1396 = vpack.c.b16 %v1383, %v1382
      %v1397 = vpack.c.b16 %v1385, %v1384
      %v1398 = vpack.c.b16 %v1387, %v1386
      %v1399 = vpack.c.b16 %v1389, %v1388
      %v1400 = vpack.c.b16 %v1391, %v1390
      %v1401 = vpack.c.b16 %v1393, %v1392
      %1410 = vmatprep.subr.bf16.mxu0 0
      %1411 = vmatpush1.bf16.msra.mxu0 %v1401
      %1412 = vmatprep.subr.bf16.mxu0 0
      %1413 = vmatpush1.bf16.msra.mxu0 %v1400
      %1414 = vmatprep.subr.bf16.mxu0 0
      %1415 = vmatpush1.bf16.msra.mxu0 %v1399
      %1416 = vmatprep.subr.bf16.mxu0 0
      %1417 = vmatpush1.bf16.msra.mxu0 %v1398
      %1418 = vmatprep.subr.bf16.mxu0 0
      %1419 = vmatpush1.bf16.msra.mxu0 %v1397
      %1420 = vmatprep.subr.bf16.mxu0 0
      %1421 = vmatpush1.bf16.msra.mxu0 %v1396
      %1422 = vmatprep.subr.bf16.mxu0 0
      %1423 = vmatpush1.bf16.msra.mxu0 %v1395
      %1424 = vmatprep.subr.bf16.mxu0 0
      %1425 = vmatpush1.bf16.msra.mxu0 %v1394
      %1426 = vmatprep.subr.bf16.mxu0 0
      %1427 = vmatpush2.bf16.msra.mxu0 0
      %1428 = vmatprep.subr.bf16.mxu0 0
      %1429 = vmatpush2.bf16.msra.mxu0 0
      %1430 = vmatprep.subr.bf16.mxu0 0
      %1431 = vmatpush2.bf16.msra.mxu0 0
      %1432 = vmatprep.subr.bf16.mxu0 0
      %1433 = vmatpush2.bf16.msra.mxu0 0
      %1434 = vmatprep.subr.bf16.mxu0 0
      %1435 = vmatpush2.bf16.msra.mxu0 0
      %1436 = vmatprep.subr.bf16.mxu0 0
      %1437 = vmatpush2.bf16.msra.mxu0 0
      %1438 = vmatprep.subr.bf16.mxu0 0
      %1439 = vmatpush2.bf16.msra.mxu0 0
      %1440 = vmatprep.subr.bf16.mxu0 0
      %1441 = vmatpush2.bf16.msra.mxu0 0
      %1442 = vmatprep.mubr.bf16.mxu0 0
      %1443 = vmatmul.mubr.bf16.gmra.mxu0 %v1338
      %v1444 = vpop.f32.mrf.mxu0
      %v1445 = vadd.f32 %v1360, %v1444
      %v1446 = vpop.f32.mrf.mxu0
      %v1447 = vpop.f32.mrf.mxu0
      %v1448 = vpop.f32.mrf.mxu0
      %1449 = vdwg.mxu0
      %v1450 = vadd.f32 %v1232, %v1445
      %1451 = vst.msk [vmem:[%s476] sm:$0xff] %vm482, %v1450
      %p1452 = scmp.lt.s32.totalorder %s25, 1
      %s1453 = scalar_select %p1452, %s25, 1
      %s1454 = smul.addr %s1453, 8
      %s1455 = scalar_lea.vmem %s14, %s1454
      // Predicated region
      $region77: #{transformer_forward.3} parent=75 // pred_check
        %p1456 = pneg %p347
      $region78: #{transformer_forward.3} parent=75 // pred_check_branch
        %1458 = sbr.rel (%p1456) target = $region80
      $region79: #{transformer_forward.3} parent=75 // pred_region
        _
      $region80: #{transformer_forward.3} parent=75 // pred_fallthru
        _
    $region76: #{transformer_forward.3} parent=5 // pred_fallthru
      _
    %p1459 = scmp.le.s32.totalorder 2, %s20
    // Predicated region
    $region81: #{transformer_forward.3} parent=5 // pred_check
      %p1460 = pneg %p1459
    $region82: #{transformer_forward.3} parent=5 // pred_check_branch
      %1462 = sbr.rel (%p1460) target = $region84
    $region83: #{transformer_forward.3} parent=5 // pred_region
      %s1463 = ssub.s32 %s20, 2
      // Predicated region
      $region85: #{transformer_forward.3} parent=83 // pred_check
        %p1464 = pneg %p353
      $region86: #{transformer_forward.3} parent=83 // pred_check_branch
        %1466 = sbr.rel (%p1464) target = $region88
      $region87: #{transformer_forward.3} parent=83 // pred_region
        %p1467 = scmp.lt.s32.totalorder %s26, 1
        %s1468 = scalar_select %p1467, %s26, 1
        %s1469 = smul.addr %s1468, 8
        %s1470 = scalar_lea.vmem %s14, %s1469
      $region88: #{transformer_forward.3} parent=83 // pred_fallthru
        _
    $region84: #{transformer_forward.3} parent=5 // pred_fallthru
      _
  $region6: #{transformer_forward.3} parent=0 // loop_footer
    %s24 = sadd.s32 1, %s20
  $region7: #{transformer_forward.3} parent=0 // loop_footer_branch
    %19 = sbr.rel target = $region3
  $region8: #{transformer_forward.3} parent=0 // loop_exit
    _

</llo_original>
